<compile_context>
chip_gen: v6e
topology: v6e:2x2x1
jax: 0.10.0
libtpu: 0.0.40
codegen_flags: <defaults>
</compile_context>

<pallas_src>
import functools

import jax
import jax.numpy as jnp
from jax.experimental import pallas as pl
from jax.experimental.pallas import tpu as pltpu


def _bilstm_block_kernel(xa_ref, m_ref, whh_ref, out_ref, h_scr, c_scr, *,
                         time_block, hidden):
    """Fused bidirectional LSTM recurrence over one block of `time_block` steps.

    xa_ref : (TB, 2, B, 4H)  precomputed x @ W_ih + (b_ih + b_hh); direction 1
                             is already time-reversed.
    m_ref  : (TB, 2, B, 1)   float validity mask (1.0 iff t < length)
    whh_ref: (2, H, 4H)      recurrent weights, gate column order [i, f, g, o]
    out_ref: (TB, 2, B, H)   hidden outputs (direction 1 in reversed time order)
    h_scr/c_scr: (2, B, H)   recurrent state carried across grid steps (VMEM)
    """
    H = hidden

    @pl.when(pl.program_id(0) == 0)
    def _():
        h_scr[...] = jnp.zeros_like(h_scr)
        c_scr[...] = jnp.zeros_like(c_scr)

    whh = whh_ref[...]          # (2, H, 4H), resident in VMEM across the grid
    h = h_scr[...]
    c = c_scr[...]

    # Unrolled inner time loop (time_block is small and static, so this Python
    # loop is a full unroll).  Per step: one batched (2,B,H)@(2,H,4H) matmul
    # plus elementwise gate math -- everything else was hoisted out.
    for i in range(time_block):
        gates = xa_ref[i] + jnp.einsum(
            "dbh,dhg->dbg", h, whh, preferred_element_type=jnp.float32)
        i_g = jax.nn.sigmoid(gates[..., 0 * H:1 * H])
        f_g = jax.nn.sigmoid(gates[..., 1 * H:2 * H])
        g_g = jnp.tanh(gates[..., 2 * H:3 * H])
        o_g = jax.nn.sigmoid(gates[..., 3 * H:4 * H])
        c_new = f_g * c + i_g * g_g
        h_new = o_g * jnp.tanh(c_new)

        # packed-sequence semantics: padded steps emit exact zeros and do not
        # advance the state (mask is 0.0/1.0, so m*h_new is exactly 0 there).
        m = m_ref[i]            # (2, B, 1), broadcasts over H
        not_m = 1.0 - m
        out_ref[i] = m * h_new
        h = m * h_new + not_m * h
        c = m * c_new + not_m * c

    h_scr[...] = h
    c_scr[...] = c


def _prep_direction(dirp):
    """PyTorch LSTM weights -> packed-gate layout [i|f|g|o] along the 4H axis."""
    w_ih_t = jnp.transpose(dirp["w_ih"])   # (I, 4H)
    w_hh_t = jnp.transpose(dirp["w_hh"])   # (H, 4H)
    bias = dirp["b_ih"] + dirp["b_hh"]     # (4H,)
    return w_ih_t, w_hh_t, bias


def _bilstm_layer(x_tm, mask, layer_params, *, time_block):
    """One bidirectional LSTM layer over a (padded) time-major input.

    x_tm : (T_pad, B, I) float32, T_pad a multiple of time_block
    mask : (T_pad, 2, B, 1) float32 ([:, 0] forward order, [:, 1] time-reversed)
    returns (T_pad, B, 2H) float32
    """
    T_pad, B, I = x_tm.shape
    wih_f, whh_f, b_f = _prep_direction(layer_params["fwd"])
    wih_b, whh_b, b_b = _prep_direction(layer_params["bwd"])
    H = whh_f.shape[0]
    G = 4 * H

    # Hoisted input projection: one big matmul for all timesteps and both
    # directions, bias folded in.  The serial kernel only sees pre-activations.
    w_cat = jnp.concatenate([wih_f, wih_b], axis=1)           # (I, 2G)
    b_cat = jnp.concatenate([b_f, b_b], axis=0)               # (2G,)
    a = jnp.dot(x_tm.reshape(T_pad * B, I), w_cat,
                precision=jax.lax.Precision.HIGHEST) + b_cat
    a = a.reshape(T_pad, B, 2 * G)
    # direction 1 (backward) gets its pre-activations time-reversed here so the
    # kernel can walk both directions with the same increasing index.
    xa = jnp.stack([a[..., :G], a[..., G:][::-1]], axis=1)    # (T_pad, 2, B, G)
    whh = jnp.stack([whh_f, whh_b], axis=0)                   # (2, H, G)

    out = pl.pallas_call(
        functools.partial(_bilstm_block_kernel,
                          time_block=time_block, hidden=H),
        out_shape=jax.ShapeDtypeStruct((T_pad, 2, B, H), jnp.float32),
        grid_spec=pltpu.PrefetchScalarGridSpec(
            num_scalar_prefetch=0,
            grid=(T_pad // time_block,),
            in_specs=[
                pl.BlockSpec((time_block, 2, B, G), lambda s: (s, 0, 0, 0)),
                pl.BlockSpec((time_block, 2, B, 1), lambda s: (s, 0, 0, 0)),
                pl.BlockSpec((2, H, G), lambda s: (0, 0, 0)),   # resident
            ],
            out_specs=pl.BlockSpec((time_block, 2, B, H),
                                   lambda s: (s, 0, 0, 0)),
            scratch_shapes=[pltpu.VMEM((2, B, H), jnp.float32),   # h state
                            pltpu.VMEM((2, B, H), jnp.float32)],  # c state
        ),
        compiler_params=pltpu.CompilerParams(
            dimension_semantics=("arbitrary",)),    # sequential recurrence
    )(xa, mask, whh)

    out_f = out[:, 0]                  # (T_pad, B, H), forward time order
    out_b = out[:, 1][::-1]            # un-reverse the backward direction
    return jnp.concatenate([out_f, out_b], axis=-1)


def init_mtlstm_params(key, input_dim, hidden_dim, num_layers=2):
    """Deterministic stand-in for the pretrained wmt-lstm state_dict.

    Matches nn.LSTM(input_dim, hidden_dim, num_layers=2, bidirectional=True)
    parameter shapes; uniform(-1/sqrt(H), 1/sqrt(H)) like PyTorch init.
    """
    params = []
    bound = 1.0 / float(jnp.sqrt(jnp.float32(hidden_dim)))
    for layer in range(num_layers):
        in_dim = input_dim if layer == 0 else 2 * hidden_dim
        layer_params = {}
        for direction in ("fwd", "bwd"):
            key, k0, k1, k2, k3 = jax.random.split(key, 5)
            layer_params[direction] = {
                "w_ih": jax.random.uniform(k0, (4 * hidden_dim, in_dim),
                                           jnp.float32, -bound, bound),
                "w_hh": jax.random.uniform(k1, (4 * hidden_dim, hidden_dim),
                                           jnp.float32, -bound, bound),
                "b_ih": jax.random.uniform(k2, (4 * hidden_dim,),
                                           jnp.float32, -bound, bound),
                "b_hh": jax.random.uniform(k3, (4 * hidden_dim,),
                                           jnp.float32, -bound, bound),
            }
        params.append(layer_params)
    return params


def mtlstm_forward(params, inputs, lengths, *, time_block=8):
    """MTLSTM.forward for the default config (layer1 only, no embedding,
    no residual embeddings, trainable=False).

    inputs  : (B, T, D) float32  (batch_first, like PyTorch)
    lengths : (B,) int32
    returns : (B, max(lengths), 2*H) float32 -- top-layer bidirectional outputs
    """
    B, T, _ = inputs.shape
    lengths = lengths.astype(jnp.int32)

    # sort by length descending / unsort afterwards (mirrors pack_padded_sequence);
    # semantically a no-op here since the kernel masks per sequence.
    order = jnp.argsort(-lengths)
    inv_order = jnp.argsort(order)
    x = inputs[order]
    lens_sorted = lengths[order]

    time_block = min(time_block, T)
    T_pad = int(pl.cdiv(T, time_block)) * time_block
    x_tm = jnp.transpose(x, (1, 0, 2))                     # (T, B, D) time-major
    if T_pad != T:
        x_tm = jnp.pad(x_tm, ((0, T_pad - T), (0, 0), (0, 0)))

    # validity mask precomputed once (folds the per-step length compare out of
    # the serial loop).  [:, 0] is forward time order, [:, 1] reversed.
    t_idx = jnp.arange(T_pad, dtype=jnp.int32)[:, None]    # (T_pad, 1)
    m_f = (t_idx < lens_sorted[None, :]).astype(jnp.float32)
    m_b = ((T_pad - 1 - t_idx) < lens_sorted[None, :]).astype(jnp.float32)
    mask = jnp.stack([m_f, m_b], axis=1)[..., None]        # (T_pad, 2, B, 1)

    h = x_tm
    for layer in params:
        h = _bilstm_layer(h, mask, layer, time_block=time_block)

    out = jnp.transpose(h[:T], (1, 0, 2))[inv_order]       # (B, T, 2H)

    # pad_packed_sequence trims to max(lengths).  Host sync; done eagerly
    # outside any jit (at real scale keep full T and trim downstream instead).
    t_max = int(jax.device_get(jnp.max(lengths)))
    out = out[:, :t_max]

    # trainable=False -> outputs.detach()
    return jax.lax.stop_gradient(out)


# ----------------------------------------------------------------------------
# Pure-JAX reference (lax.scan) for correctness checking.
# ----------------------------------------------------------------------------
def _lstm_ref_direction(x_tm, lengths, w_ih, w_hh, b_ih, b_hh, reverse):
    T, B, _ = x_tm.shape
    H = w_hh.shape[1]
    w_ih_t = w_ih.T
    w_hh_t = w_hh.T
    b = b_ih + b_hh
    hp = jax.lax.Precision.HIGHEST

    def step(carry, t):
        h, c = carry
        x_t = x_tm[t]
        gates = (jnp.dot(x_t, w_ih_t, precision=hp)
                 + jnp.dot(h, w_hh_t, precision=hp) + b)
        i_g = jax.nn.sigmoid(gates[:, 0 * H:1 * H])
        f_g = jax.nn.sigmoid(gates[:, 1 * H:2 * H])
        g_g = jnp.tanh(gates[:, 2 * H:3 * H])
        o_g = jax.nn.sigmoid(gates[:, 3 * H:4 * H])
        c_new = f_g * c + i_g * g_g
        h_new = o_g * jnp.tanh(c_new)
        valid = (t < lengths)[:, None]
        h = jnp.where(valid, h_new, h)
        c = jnp.where(valid, c_new, c)
        out = jnp.where(valid, h_new, jnp.zeros_like(h_new))
        return (h, c), out

    ts = jnp.arange(T - 1, -1, -1) if reverse else jnp.arange(T)
    init = (jnp.zeros((B, H), jnp.float32), jnp.zeros((B, H), jnp.float32))
    _, outs = jax.lax.scan(step, init, ts)
    if reverse:
        outs = outs[::-1]
    return outs                                        # (T, B, H), forward order


def mtlstm_forward_ref(params, inputs, lengths):
    lens = lengths.astype(jnp.int32)
    h = jnp.transpose(inputs, (1, 0, 2))
    for layer in params:
        f = _lstm_ref_direction(h, lens, reverse=False, **layer["fwd"])
        b = _lstm_ref_direction(h, lens, reverse=True, **layer["bwd"])
        h = jnp.concatenate([f, b], axis=-1)
    out = jnp.transpose(h, (1, 0, 2))
    t_max = int(jax.device_get(jnp.max(lens)))
    return out[:, :t_max]


# TODO(synk): n_vocab embedding lookup, layer0-output / residual_embeddings
# concat variants not exercised by the default forward; only the default
# (2-layer bidirectional LSTM -> layer1 outputs) path is implemented.


if __name__ == "__main__":
    key = jax.random.PRNGKey(0)
    B, T, D, H = 2, 8, 32, 32   # scaled-down stand-ins for 300-d GloVe / 300-d LSTM

    k_in, k_p = jax.random.split(key)
    inputs = jax.random.normal(k_in, (B, T, D), dtype=jnp.float32)
    lengths = jnp.array([T, 5], dtype=jnp.int32)

    params = init_mtlstm_params(k_p, D, H, num_layers=2)

    # time_block=4 gives a 2-step grid at T=8 so the cross-block state carry is
    # exercised; use 8-32 at real sequence lengths to amortize grid overhead.
    out = mtlstm_forward(params, inputs, lengths, time_block=4)
    out = jax.block_until_ready(out)

    assert out.shape == (B, T, 2 * H), out.shape
    assert out.dtype == jnp.float32
    # padded positions of the shorter sequence must be exactly zero
    assert bool(jnp.all(out[1, 5:] == 0.0))

    # numerical check against a pure-JAX bidirectional-LSTM reference
    ref = mtlstm_forward_ref(params, inputs, lengths)
    assert ref.shape == out.shape
    assert bool(jnp.allclose(out, ref, atol=5e-3, rtol=5e-3)), \
        float(jnp.max(jnp.abs(out - ref)))

    print("KERNEL_OK")
</pallas_src>

<mosaic_0001>
module attributes {stable_mosaic.version = 11 : i64} {
  func.func @_bilstm_block_kernel(%arg0: i32, %arg1: memref<4x2x2x128xf32, #tpu.memory_space<vmem>>, %arg2: memref<4x2x2x1xf32, #tpu.memory_space<vmem>>, %arg3: memref<2x32x128xf32, #tpu.memory_space<vmem>>, %arg4: memref<4x2x2x32xf32, #tpu.memory_space<vmem>>, %arg5: memref<2x2x32xf32, #tpu.memory_space<vmem>>, %arg6: memref<2x2x32xf32, #tpu.memory_space<vmem>>) attributes {dimension_semantics = [#tpu.dimension_semantics<arbitrary>], iteration_bounds = array<i64: 2>, scalar_prefetch = 0 : i64, scratch_operands = 2 : i64, tpu.core_type = #tpu.core_type<tc>, window_params = [{transform_indices = @transform_0, window_bounds = array<i64: 4, 2, 2, 128>}, {transform_indices = @transform_1, window_bounds = array<i64: 4, 2, 2, 1>}, {pipeline_mode = #tpu.pipeline_mode<synchronous>, transform_indices = @transform_2, window_bounds = array<i64: 2, 32, 128>}, {transform_indices = @transform_3, window_bounds = array<i64: 4, 2, 2, 32>}]} {
    %c0_i32 = arith.constant 0 : i32
    %0 = arith.cmpi eq, %arg0, %c0_i32 : i32
    %1 = arith.extui %0 : i1 to i32
    %c0_i32_0 = arith.constant 0 : i32
    %2 = arith.cmpi ne, %1, %c0_i32_0 : i32
    scf.if %2 {
      %cst_79 = arith.constant 0.000000e+00 : f32
      %200 = vector.broadcast %cst_79 : f32 to vector<2x2x32xf32>
      %c0_80 = arith.constant 0 : index
      %c0_81 = arith.constant 0 : index
      %c0_82 = arith.constant 0 : index
      %201 = vector.load %arg5[%c0_80, %c0_81, %c0_82] : memref<2x2x32xf32, #tpu.memory_space<vmem>>, vector<2x2x32xf32>
      tpu.vector_store %arg5[%c0_80, %c0_81, %c0_82], %200 {strides = array<i32>} : memref<2x2x32xf32, #tpu.memory_space<vmem>>, vector<2x2x32xf32>,
      %cst_83 = arith.constant 0.000000e+00 : f32
      %202 = vector.broadcast %cst_83 : f32 to vector<2x2x32xf32>
      %c0_84 = arith.constant 0 : index
      %c0_85 = arith.constant 0 : index
      %c0_86 = arith.constant 0 : index
      %203 = vector.load %arg6[%c0_84, %c0_85, %c0_86] : memref<2x2x32xf32, #tpu.memory_space<vmem>>, vector<2x2x32xf32>
      tpu.vector_store %arg6[%c0_84, %c0_85, %c0_86], %202 {strides = array<i32>} : memref<2x2x32xf32, #tpu.memory_space<vmem>>, vector<2x2x32xf32>,
    } else {
    }
    %c0 = arith.constant 0 : index
    %c0_1 = arith.constant 0 : index
    %c0_2 = arith.constant 0 : index
    %3 = vector.load %arg3[%c0, %c0_1, %c0_2] : memref<2x32x128xf32, #tpu.memory_space<vmem>>, vector<2x32x128xf32>
    %c0_3 = arith.constant 0 : index
    %c0_4 = arith.constant 0 : index
    %c0_5 = arith.constant 0 : index
    %4 = vector.load %arg5[%c0_3, %c0_4, %c0_5] : memref<2x2x32xf32, #tpu.memory_space<vmem>>, vector<2x2x32xf32>
    %c0_6 = arith.constant 0 : index
    %c0_7 = arith.constant 0 : index
    %c0_8 = arith.constant 0 : index
    %5 = vector.load %arg6[%c0_6, %c0_7, %c0_8] : memref<2x2x32xf32, #tpu.memory_space<vmem>>, vector<2x2x32xf32>
    %c0_9 = arith.constant 0 : index
    %c0_10 = arith.constant 0 : index
    %c0_11 = arith.constant 0 : index
    %c0_12 = arith.constant 0 : index
    %6 = vector.load %arg1[%c0_9, %c0_10, %c0_11, %c0_12] : memref<4x2x2x128xf32, #tpu.memory_space<vmem>>, vector<1x2x2x128xf32>
    %7 = vector.shape_cast %6 : vector<1x2x2x128xf32> to vector<2x2x128xf32>
    "tpu.trace_start"() <{level = 10 : i32, message = "dbh,dhg->dbg"}> : () -> ()
    %cst = arith.constant dense<0.000000e+00> : vector<2x2x128xf32>
    %8 = tpu.matmul %4, %3, %cst {dimension_numbers = #tpu.dot_dimension_numbers<[2], [1], [1], [2], [0, 0, 0, 1, 1, 2], [0], [0]>} : vector<2x2x32xf32>, vector<2x32x128xf32>, vector<2x2x128xf32> -> vector<2x2x128xf32>
    "tpu.trace_stop"() : () -> ()
    %9 = arith.addf %7, %8 : vector<2x2x128xf32>
    %10 = vector.extract_strided_slice %9 {offsets = [0, 0, 0], sizes = [2, 2, 32], strides = [1, 1, 1]} : vector<2x2x128xf32> to vector<2x2x32xf32>
    %11 = arith.negf %10 : vector<2x2x32xf32>
    %12 = math.exp %11 : vector<2x2x32xf32>
    %cst_13 = arith.constant 1.000000e+00 : f32
    %13 = vector.broadcast %cst_13 : f32 to vector<2x2x32xf32>
    %14 = arith.addf %13, %12 : vector<2x2x32xf32>
    %15 = arith.divf %13, %14 : vector<2x2x32xf32>
    %16 = vector.extract_strided_slice %9 {offsets = [0, 0, 32], sizes = [2, 2, 32], strides = [1, 1, 1]} : vector<2x2x128xf32> to vector<2x2x32xf32>
    %17 = arith.negf %16 : vector<2x2x32xf32>
    %18 = math.exp %17 : vector<2x2x32xf32>
    %cst_14 = arith.constant 1.000000e+00 : f32
    %19 = vector.broadcast %cst_14 : f32 to vector<2x2x32xf32>
    %20 = arith.addf %19, %18 : vector<2x2x32xf32>
    %21 = arith.divf %19, %20 : vector<2x2x32xf32>
    %22 = vector.extract_strided_slice %9 {offsets = [0, 0, 64], sizes = [2, 2, 32], strides = [1, 1, 1]} : vector<2x2x128xf32> to vector<2x2x32xf32>
    %23 = math.tanh %22 : vector<2x2x32xf32>
    %24 = vector.extract_strided_slice %9 {offsets = [0, 0, 96], sizes = [2, 2, 32], strides = [1, 1, 1]} : vector<2x2x128xf32> to vector<2x2x32xf32>
    %25 = arith.negf %24 : vector<2x2x32xf32>
    %26 = math.exp %25 : vector<2x2x32xf32>
    %cst_15 = arith.constant 1.000000e+00 : f32
    %27 = vector.broadcast %cst_15 : f32 to vector<2x2x32xf32>
    %28 = arith.addf %27, %26 : vector<2x2x32xf32>
    %29 = arith.divf %27, %28 : vector<2x2x32xf32>
    %30 = arith.mulf %21, %5 : vector<2x2x32xf32>
    %31 = arith.mulf %15, %23 : vector<2x2x32xf32>
    %32 = arith.addf %30, %31 : vector<2x2x32xf32>
    %33 = math.tanh %32 : vector<2x2x32xf32>
    %34 = arith.mulf %29, %33 : vector<2x2x32xf32>
    %c0_16 = arith.constant 0 : index
    %c0_17 = arith.constant 0 : index
    %c0_18 = arith.constant 0 : index
    %c0_19 = arith.constant 0 : index
    %35 = vector.load %arg2[%c0_16, %c0_17, %c0_18, %c0_19] : memref<4x2x2x1xf32, #tpu.memory_space<vmem>>, vector<1x2x2x1xf32>
    %36 = vector.shape_cast %35 : vector<1x2x2x1xf32> to vector<2x2x1xf32>
    %cst_20 = arith.constant 1.000000e+00 : f32
    %37 = vector.broadcast %cst_20 : f32 to vector<2x2x1xf32>
    %38 = arith.subf %37, %36 : vector<2x2x1xf32>
    %39 = vector.broadcast %36 : vector<2x2x1xf32> to vector<2x2x32xf32>
    %40 = arith.mulf %39, %34 : vector<2x2x32xf32>
    %c0_21 = arith.constant 0 : index
    %c0_22 = arith.constant 0 : index
    %c0_23 = arith.constant 0 : index
    %c0_24 = arith.constant 0 : index
    %41 = vector.load %arg4[%c0_21, %c0_22, %c0_23, %c0_24] : memref<4x2x2x32xf32, #tpu.memory_space<vmem>>, vector<1x2x2x32xf32>
    %42 = vector.shape_cast %41 : vector<1x2x2x32xf32> to vector<2x2x32xf32>
    %43 = vector.shape_cast %40 : vector<2x2x32xf32> to vector<1x2x2x32xf32>
    tpu.vector_store %arg4[%c0_21, %c0_22, %c0_23, %c0_24], %43 {strides = array<i32>} : memref<4x2x2x32xf32, #tpu.memory_space<vmem>>, vector<1x2x2x32xf32>,
    %44 = vector.broadcast %36 : vector<2x2x1xf32> to vector<2x2x32xf32>
    %45 = arith.mulf %44, %34 : vector<2x2x32xf32>
    %46 = vector.broadcast %38 : vector<2x2x1xf32> to vector<2x2x32xf32>
    %47 = arith.mulf %46, %4 : vector<2x2x32xf32>
    %48 = arith.addf %45, %47 : vector<2x2x32xf32>
    %49 = vector.broadcast %36 : vector<2x2x1xf32> to vector<2x2x32xf32>
    %50 = arith.mulf %49, %32 : vector<2x2x32xf32>
    %51 = vector.broadcast %38 : vector<2x2x1xf32> to vector<2x2x32xf32>
    %52 = arith.mulf %51, %5 : vector<2x2x32xf32>
    %53 = arith.addf %50, %52 : vector<2x2x32xf32>
    %c1 = arith.constant 1 : index
    %c0_25 = arith.constant 0 : index
    %c0_26 = arith.constant 0 : index
    %c0_27 = arith.constant 0 : index
    %54 = vector.load %arg1[%c1, %c0_25, %c0_26, %c0_27] : memref<4x2x2x128xf32, #tpu.memory_space<vmem>>, vector<1x2x2x128xf32>
    %55 = vector.shape_cast %54 : vector<1x2x2x128xf32> to vector<2x2x128xf32>
    "tpu.trace_start"() <{level = 10 : i32, message = "dbh,dhg->dbg"}> : () -> ()
    %cst_28 = arith.constant dense<0.000000e+00> : vector<2x2x128xf32>
    %56 = tpu.matmul %48, %3, %cst_28 {dimension_numbers = #tpu.dot_dimension_numbers<[2], [1], [1], [2], [0, 0, 0, 1, 1, 2], [0], [0]>} : vector<2x2x32xf32>, vector<2x32x128xf32>, vector<2x2x128xf32> -> vector<2x2x128xf32>
    "tpu.trace_stop"() : () -> ()
    %57 = arith.addf %55, %56 : vector<2x2x128xf32>
    %58 = vector.extract_strided_slice %57 {offsets = [0, 0, 0], sizes = [2, 2, 32], strides = [1, 1, 1]} : vector<2x2x128xf32> to vector<2x2x32xf32>
    %59 = arith.negf %58 : vector<2x2x32xf32>
    %60 = math.exp %59 : vector<2x2x32xf32>
    %cst_29 = arith.constant 1.000000e+00 : f32
    %61 = vector.broadcast %cst_29 : f32 to vector<2x2x32xf32>
    %62 = arith.addf %61, %60 : vector<2x2x32xf32>
    %63 = arith.divf %61, %62 : vector<2x2x32xf32>
    %64 = vector.extract_strided_slice %57 {offsets = [0, 0, 32], sizes = [2, 2, 32], strides = [1, 1, 1]} : vector<2x2x128xf32> to vector<2x2x32xf32>
    %65 = arith.negf %64 : vector<2x2x32xf32>
    %66 = math.exp %65 : vector<2x2x32xf32>
    %cst_30 = arith.constant 1.000000e+00 : f32
    %67 = vector.broadcast %cst_30 : f32 to vector<2x2x32xf32>
    %68 = arith.addf %67, %66 : vector<2x2x32xf32>
    %69 = arith.divf %67, %68 : vector<2x2x32xf32>
    %70 = vector.extract_strided_slice %57 {offsets = [0, 0, 64], sizes = [2, 2, 32], strides = [1, 1, 1]} : vector<2x2x128xf32> to vector<2x2x32xf32>
    %71 = math.tanh %70 : vector<2x2x32xf32>
    %72 = vector.extract_strided_slice %57 {offsets = [0, 0, 96], sizes = [2, 2, 32], strides = [1, 1, 1]} : vector<2x2x128xf32> to vector<2x2x32xf32>
    %73 = arith.negf %72 : vector<2x2x32xf32>
    %74 = math.exp %73 : vector<2x2x32xf32>
    %cst_31 = arith.constant 1.000000e+00 : f32
    %75 = vector.broadcast %cst_31 : f32 to vector<2x2x32xf32>
    %76 = arith.addf %75, %74 : vector<2x2x32xf32>
    %77 = arith.divf %75, %76 : vector<2x2x32xf32>
    %78 = arith.mulf %69, %53 : vector<2x2x32xf32>
    %79 = arith.mulf %63, %71 : vector<2x2x32xf32>
    %80 = arith.addf %78, %79 : vector<2x2x32xf32>
    %81 = math.tanh %80 : vector<2x2x32xf32>
    %82 = arith.mulf %77, %81 : vector<2x2x32xf32>
    %c1_32 = arith.constant 1 : index
    %c0_33 = arith.constant 0 : index
    %c0_34 = arith.constant 0 : index
    %c0_35 = arith.constant 0 : index
    %83 = vector.load %arg2[%c1_32, %c0_33, %c0_34, %c0_35] : memref<4x2x2x1xf32, #tpu.memory_space<vmem>>, vector<1x2x2x1xf32>
    %84 = vector.shape_cast %83 : vector<1x2x2x1xf32> to vector<2x2x1xf32>
    %cst_36 = arith.constant 1.000000e+00 : f32
    %85 = vector.broadcast %cst_36 : f32 to vector<2x2x1xf32>
    %86 = arith.subf %85, %84 : vector<2x2x1xf32>
    %87 = vector.broadcast %84 : vector<2x2x1xf32> to vector<2x2x32xf32>
    %88 = arith.mulf %87, %82 : vector<2x2x32xf32>
    %c1_37 = arith.constant 1 : index
    %c0_38 = arith.constant 0 : index
    %c0_39 = arith.constant 0 : index
    %c0_40 = arith.constant 0 : index
    %89 = vector.load %arg4[%c1_37, %c0_38, %c0_39, %c0_40] : memref<4x2x2x32xf32, #tpu.memory_space<vmem>>, vector<1x2x2x32xf32>
    %90 = vector.shape_cast %89 : vector<1x2x2x32xf32> to vector<2x2x32xf32>
    %91 = vector.shape_cast %88 : vector<2x2x32xf32> to vector<1x2x2x32xf32>
    tpu.vector_store %arg4[%c1_37, %c0_38, %c0_39, %c0_40], %91 {strides = array<i32>} : memref<4x2x2x32xf32, #tpu.memory_space<vmem>>, vector<1x2x2x32xf32>,
    %92 = vector.broadcast %84 : vector<2x2x1xf32> to vector<2x2x32xf32>
    %93 = arith.mulf %92, %82 : vector<2x2x32xf32>
    %94 = vector.broadcast %86 : vector<2x2x1xf32> to vector<2x2x32xf32>
    %95 = arith.mulf %94, %48 : vector<2x2x32xf32>
    %96 = arith.addf %93, %95 : vector<2x2x32xf32>
    %97 = vector.broadcast %84 : vector<2x2x1xf32> to vector<2x2x32xf32>
    %98 = arith.mulf %97, %80 : vector<2x2x32xf32>
    %99 = vector.broadcast %86 : vector<2x2x1xf32> to vector<2x2x32xf32>
    %100 = arith.mulf %99, %53 : vector<2x2x32xf32>
    %101 = arith.addf %98, %100 : vector<2x2x32xf32>
    %c2 = arith.constant 2 : index
    %c0_41 = arith.constant 0 : index
    %c0_42 = arith.constant 0 : index
    %c0_43 = arith.constant 0 : index
    %102 = vector.load %arg1[%c2, %c0_41, %c0_42, %c0_43] : memref<4x2x2x128xf32, #tpu.memory_space<vmem>>, vector<1x2x2x128xf32>
    %103 = vector.shape_cast %102 : vector<1x2x2x128xf32> to vector<2x2x128xf32>
    "tpu.trace_start"() <{level = 10 : i32, message = "dbh,dhg->dbg"}> : () -> ()
    %cst_44 = arith.constant dense<0.000000e+00> : vector<2x2x128xf32>
    %104 = tpu.matmul %96, %3, %cst_44 {dimension_numbers = #tpu.dot_dimension_numbers<[2], [1], [1], [2], [0, 0, 0, 1, 1, 2], [0], [0]>} : vector<2x2x32xf32>, vector<2x32x128xf32>, vector<2x2x128xf32> -> vector<2x2x128xf32>
    "tpu.trace_stop"() : () -> ()
    %105 = arith.addf %103, %104 : vector<2x2x128xf32>
    %106 = vector.extract_strided_slice %105 {offsets = [0, 0, 0], sizes = [2, 2, 32], strides = [1, 1, 1]} : vector<2x2x128xf32> to vector<2x2x32xf32>
    %107 = arith.negf %106 : vector<2x2x32xf32>
    %108 = math.exp %107 : vector<2x2x32xf32>
    %cst_45 = arith.constant 1.000000e+00 : f32
    %109 = vector.broadcast %cst_45 : f32 to vector<2x2x32xf32>
    %110 = arith.addf %109, %108 : vector<2x2x32xf32>
    %111 = arith.divf %109, %110 : vector<2x2x32xf32>
    %112 = vector.extract_strided_slice %105 {offsets = [0, 0, 32], sizes = [2, 2, 32], strides = [1, 1, 1]} : vector<2x2x128xf32> to vector<2x2x32xf32>
    %113 = arith.negf %112 : vector<2x2x32xf32>
    %114 = math.exp %113 : vector<2x2x32xf32>
    %cst_46 = arith.constant 1.000000e+00 : f32
    %115 = vector.broadcast %cst_46 : f32 to vector<2x2x32xf32>
    %116 = arith.addf %115, %114 : vector<2x2x32xf32>
    %117 = arith.divf %115, %116 : vector<2x2x32xf32>
    %118 = vector.extract_strided_slice %105 {offsets = [0, 0, 64], sizes = [2, 2, 32], strides = [1, 1, 1]} : vector<2x2x128xf32> to vector<2x2x32xf32>
    %119 = math.tanh %118 : vector<2x2x32xf32>
    %120 = vector.extract_strided_slice %105 {offsets = [0, 0, 96], sizes = [2, 2, 32], strides = [1, 1, 1]} : vector<2x2x128xf32> to vector<2x2x32xf32>
    %121 = arith.negf %120 : vector<2x2x32xf32>
    %122 = math.exp %121 : vector<2x2x32xf32>
    %cst_47 = arith.constant 1.000000e+00 : f32
    %123 = vector.broadcast %cst_47 : f32 to vector<2x2x32xf32>
    %124 = arith.addf %123, %122 : vector<2x2x32xf32>
    %125 = arith.divf %123, %124 : vector<2x2x32xf32>
    %126 = arith.mulf %117, %101 : vector<2x2x32xf32>
    %127 = arith.mulf %111, %119 : vector<2x2x32xf32>
    %128 = arith.addf %126, %127 : vector<2x2x32xf32>
    %129 = math.tanh %128 : vector<2x2x32xf32>
    %130 = arith.mulf %125, %129 : vector<2x2x32xf32>
    %c2_48 = arith.constant 2 : index
    %c0_49 = arith.constant 0 : index
    %c0_50 = arith.constant 0 : index
    %c0_51 = arith.constant 0 : index
    %131 = vector.load %arg2[%c2_48, %c0_49, %c0_50, %c0_51] : memref<4x2x2x1xf32, #tpu.memory_space<vmem>>, vector<1x2x2x1xf32>
    %132 = vector.shape_cast %131 : vector<1x2x2x1xf32> to vector<2x2x1xf32>
    %cst_52 = arith.constant 1.000000e+00 : f32
    %133 = vector.broadcast %cst_52 : f32 to vector<2x2x1xf32>
    %134 = arith.subf %133, %132 : vector<2x2x1xf32>
    %135 = vector.broadcast %132 : vector<2x2x1xf32> to vector<2x2x32xf32>
    %136 = arith.mulf %135, %130 : vector<2x2x32xf32>
    %c2_53 = arith.constant 2 : index
    %c0_54 = arith.constant 0 : index
    %c0_55 = arith.constant 0 : index
    %c0_56 = arith.constant 0 : index
    %137 = vector.load %arg4[%c2_53, %c0_54, %c0_55, %c0_56] : memref<4x2x2x32xf32, #tpu.memory_space<vmem>>, vector<1x2x2x32xf32>
    %138 = vector.shape_cast %137 : vector<1x2x2x32xf32> to vector<2x2x32xf32>
    %139 = vector.shape_cast %136 : vector<2x2x32xf32> to vector<1x2x2x32xf32>
    tpu.vector_store %arg4[%c2_53, %c0_54, %c0_55, %c0_56], %139 {strides = array<i32>} : memref<4x2x2x32xf32, #tpu.memory_space<vmem>>, vector<1x2x2x32xf32>,
    %140 = vector.broadcast %132 : vector<2x2x1xf32> to vector<2x2x32xf32>
    %141 = arith.mulf %140, %130 : vector<2x2x32xf32>
    %142 = vector.broadcast %134 : vector<2x2x1xf32> to vector<2x2x32xf32>
    %143 = arith.mulf %142, %96 : vector<2x2x32xf32>
    %144 = arith.addf %141, %143 : vector<2x2x32xf32>
    %145 = vector.broadcast %132 : vector<2x2x1xf32> to vector<2x2x32xf32>
    %146 = arith.mulf %145, %128 : vector<2x2x32xf32>
    %147 = vector.broadcast %134 : vector<2x2x1xf32> to vector<2x2x32xf32>
    %148 = arith.mulf %147, %101 : vector<2x2x32xf32>
    %149 = arith.addf %146, %148 : vector<2x2x32xf32>
    %c3 = arith.constant 3 : index
    %c0_57 = arith.constant 0 : index
    %c0_58 = arith.constant 0 : index
    %c0_59 = arith.constant 0 : index
    %150 = vector.load %arg1[%c3, %c0_57, %c0_58, %c0_59] : memref<4x2x2x128xf32, #tpu.memory_space<vmem>>, vector<1x2x2x128xf32>
    %151 = vector.shape_cast %150 : vector<1x2x2x128xf32> to vector<2x2x128xf32>
    "tpu.trace_start"() <{level = 10 : i32, message = "dbh,dhg->dbg"}> : () -> ()
    %cst_60 = arith.constant dense<0.000000e+00> : vector<2x2x128xf32>
    %152 = tpu.matmul %144, %3, %cst_60 {dimension_numbers = #tpu.dot_dimension_numbers<[2], [1], [1], [2], [0, 0, 0, 1, 1, 2], [0], [0]>} : vector<2x2x32xf32>, vector<2x32x128xf32>, vector<2x2x128xf32> -> vector<2x2x128xf32>
    "tpu.trace_stop"() : () -> ()
    %153 = arith.addf %151, %152 : vector<2x2x128xf32>
    %154 = vector.extract_strided_slice %153 {offsets = [0, 0, 0], sizes = [2, 2, 32], strides = [1, 1, 1]} : vector<2x2x128xf32> to vector<2x2x32xf32>
    %155 = arith.negf %154 : vector<2x2x32xf32>
    %156 = math.exp %155 : vector<2x2x32xf32>
    %cst_61 = arith.constant 1.000000e+00 : f32
    %157 = vector.broadcast %cst_61 : f32 to vector<2x2x32xf32>
    %158 = arith.addf %157, %156 : vector<2x2x32xf32>
    %159 = arith.divf %157, %158 : vector<2x2x32xf32>
    %160 = vector.extract_strided_slice %153 {offsets = [0, 0, 32], sizes = [2, 2, 32], strides = [1, 1, 1]} : vector<2x2x128xf32> to vector<2x2x32xf32>
    %161 = arith.negf %160 : vector<2x2x32xf32>
    %162 = math.exp %161 : vector<2x2x32xf32>
    %cst_62 = arith.constant 1.000000e+00 : f32
    %163 = vector.broadcast %cst_62 : f32 to vector<2x2x32xf32>
    %164 = arith.addf %163, %162 : vector<2x2x32xf32>
    %165 = arith.divf %163, %164 : vector<2x2x32xf32>
    %166 = vector.extract_strided_slice %153 {offsets = [0, 0, 64], sizes = [2, 2, 32], strides = [1, 1, 1]} : vector<2x2x128xf32> to vector<2x2x32xf32>
    %167 = math.tanh %166 : vector<2x2x32xf32>
    %168 = vector.extract_strided_slice %153 {offsets = [0, 0, 96], sizes = [2, 2, 32], strides = [1, 1, 1]} : vector<2x2x128xf32> to vector<2x2x32xf32>
    %169 = arith.negf %168 : vector<2x2x32xf32>
    %170 = math.exp %169 : vector<2x2x32xf32>
    %cst_63 = arith.constant 1.000000e+00 : f32
    %171 = vector.broadcast %cst_63 : f32 to vector<2x2x32xf32>
    %172 = arith.addf %171, %170 : vector<2x2x32xf32>
    %173 = arith.divf %171, %172 : vector<2x2x32xf32>
    %174 = arith.mulf %165, %149 : vector<2x2x32xf32>
    %175 = arith.mulf %159, %167 : vector<2x2x32xf32>
    %176 = arith.addf %174, %175 : vector<2x2x32xf32>
    %177 = math.tanh %176 : vector<2x2x32xf32>
    %178 = arith.mulf %173, %177 : vector<2x2x32xf32>
    %c3_64 = arith.constant 3 : index
    %c0_65 = arith.constant 0 : index
    %c0_66 = arith.constant 0 : index
    %c0_67 = arith.constant 0 : index
    %179 = vector.load %arg2[%c3_64, %c0_65, %c0_66, %c0_67] : memref<4x2x2x1xf32, #tpu.memory_space<vmem>>, vector<1x2x2x1xf32>
    %180 = vector.shape_cast %179 : vector<1x2x2x1xf32> to vector<2x2x1xf32>
    %cst_68 = arith.constant 1.000000e+00 : f32
    %181 = vector.broadcast %cst_68 : f32 to vector<2x2x1xf32>
    %182 = arith.subf %181, %180 : vector<2x2x1xf32>
    %183 = vector.broadcast %180 : vector<2x2x1xf32> to vector<2x2x32xf32>
    %184 = arith.mulf %183, %178 : vector<2x2x32xf32>
    %c3_69 = arith.constant 3 : index
    %c0_70 = arith.constant 0 : index
    %c0_71 = arith.constant 0 : index
    %c0_72 = arith.constant 0 : index
    %185 = vector.load %arg4[%c3_69, %c0_70, %c0_71, %c0_72] : memref<4x2x2x32xf32, #tpu.memory_space<vmem>>, vector<1x2x2x32xf32>
    %186 = vector.shape_cast %185 : vector<1x2x2x32xf32> to vector<2x2x32xf32>
    %187 = vector.shape_cast %184 : vector<2x2x32xf32> to vector<1x2x2x32xf32>
    tpu.vector_store %arg4[%c3_69, %c0_70, %c0_71, %c0_72], %187 {strides = array<i32>} : memref<4x2x2x32xf32, #tpu.memory_space<vmem>>, vector<1x2x2x32xf32>,
    %188 = vector.broadcast %180 : vector<2x2x1xf32> to vector<2x2x32xf32>
    %189 = arith.mulf %188, %178 : vector<2x2x32xf32>
    %190 = vector.broadcast %182 : vector<2x2x1xf32> to vector<2x2x32xf32>
    %191 = arith.mulf %190, %144 : vector<2x2x32xf32>
    %192 = arith.addf %189, %191 : vector<2x2x32xf32>
    %193 = vector.broadcast %180 : vector<2x2x1xf32> to vector<2x2x32xf32>
    %194 = arith.mulf %193, %176 : vector<2x2x32xf32>
    %195 = vector.broadcast %182 : vector<2x2x1xf32> to vector<2x2x32xf32>
    %196 = arith.mulf %195, %149 : vector<2x2x32xf32>
    %197 = arith.addf %194, %196 : vector<2x2x32xf32>
    %c0_73 = arith.constant 0 : index
    %c0_74 = arith.constant 0 : index
    %c0_75 = arith.constant 0 : index
    %198 = vector.load %arg5[%c0_73, %c0_74, %c0_75] : memref<2x2x32xf32, #tpu.memory_space<vmem>>, vector<2x2x32xf32>
    tpu.vector_store %arg5[%c0_73, %c0_74, %c0_75], %192 {strides = array<i32>} : memref<2x2x32xf32, #tpu.memory_space<vmem>>, vector<2x2x32xf32>,
    %c0_76 = arith.constant 0 : index
    %c0_77 = arith.constant 0 : index
    %c0_78 = arith.constant 0 : index
    %199 = vector.load %arg6[%c0_76, %c0_77, %c0_78] : memref<2x2x32xf32, #tpu.memory_space<vmem>>, vector<2x2x32xf32>
    tpu.vector_store %arg6[%c0_76, %c0_77, %c0_78], %197 {strides = array<i32>} : memref<2x2x32xf32, #tpu.memory_space<vmem>>, vector<2x2x32xf32>,
    return
  }
  func.func @transform_0(%arg0: i32) -> (i32, i32, i32, i32) {
    %c0_i32 = arith.constant 0 : i32
    %c0_i32_0 = arith.constant 0 : i32
    %c0_i32_1 = arith.constant 0 : i32
    %c0_i32_2 = arith.constant 0 : i32
    return %arg0, %c0_i32, %c0_i32_0, %c0_i32_1 : i32, i32, i32, i32
  }
  func.func @transform_1(%arg0: i32) -> (i32, i32, i32, i32) {
    %c0_i32 = arith.constant 0 : i32
    %c0_i32_0 = arith.constant 0 : i32
    %c0_i32_1 = arith.constant 0 : i32
    %c0_i32_2 = arith.constant 0 : i32
    return %arg0, %c0_i32, %c0_i32_0, %c0_i32_1 : i32, i32, i32, i32
  }
  func.func @transform_2(%arg0: i32) -> (i32, i32, i32) {
    %c0_i32 = arith.constant 0 : i32
    %c0_i32_0 = arith.constant 0 : i32
    %c0_i32_1 = arith.constant 0 : i32
    %c0_i32_2 = arith.constant 0 : i32
    return %c0_i32, %c0_i32_0, %c0_i32_1 : i32, i32, i32
  }
  func.func @transform_3(%arg0: i32) -> (i32, i32, i32, i32) {
    %c0_i32 = arith.constant 0 : i32
    %c0_i32_0 = arith.constant 0 : i32
    %c0_i32_1 = arith.constant 0 : i32
    %c0_i32_2 = arith.constant 0 : i32
    return %arg0, %c0_i32, %c0_i32_0, %c0_i32_1 : i32, i32, i32, i32
  }
}

</mosaic_0001>

<llo_original>
// kernel: tpu_custom_call.1
$region0: #{tpu_custom_call.1}
  #allocation0 [shape = 'u32[]', space=smem, size = 0x4, offset = 0x4, fixed_abs, tag = 'smem constant byte address 0x4 - core index']
  #allocation1 [shape = 'u32[144,128]{1,0:T(1,128)}', space=vmem, size = 0x12000, scoped, tag = 'internal scratch']
  #allocation2 [shape = 'f32[2,2,32]{2,1,0:T(2,128)}', space=vmem, size = 0x800, scoped, tag = 'scratch operand']
  #allocation3 [shape = 'f32[2,2,32]{2,1,0:T(2,128)}', space=vmem, size = 0x800, scoped, tag = 'scratch operand']
  %s0 = inlined_call_operand.vmem [shape: f32[8,2,2,128], index: 0, kind: input, shape index: {}]
  %s1 = inlined_call_operand.vmem [shape: f32[8,2,2,1], index: 1, kind: input, shape index: {}]
  %s2 = inlined_call_operand.hbm [shape: f32[2,32,128], index: 2, kind: input, shape index: {}]
  %s3 = inlined_call_operand.hbm [shape: f32[8,2,2,32], index: 3, kind: output, shape index: {}]
  %s4 = sld [smem:[#allocation0]]
  $region53: #{tpu_custom_call.1} parent=0
    _
  %s6 = ssub.s32 1, %s4
  %s7 = scalar_select 0, %s6, %s4
  $region1: #{tpu_custom_call.1} parent=0
    #allocation4 [shape = 'u8[32768]{0}', space=vmem, size = 0x8000, scoped, tag = 'input window, operand 2, single buffered']
    #allocation5 [shape = 's32[2]{0}', space=sflag, size = 0x8, scoped, tag = 'scoped memory for tpu_custom_call.1']
    #allocation6 [shape = 's32[2]{0}', space=sflag, size = 0x8, scoped, tag = 'scoped memory for tpu_custom_call.1']
    #allocation7 [shape = 'u8[16384]{0}', space=vmem, size = 0x4000, scoped, tag = 'output window, operand 0']
    %8 = vsyncpa [#allocation5], 0
    %9 = vsyncpa [#allocation6], 0
    %s10 = scalar_lea.sflag [#allocation6], 1
    %11 = vsyncpa %s10, 0
    loop: start=0, step=1, limit=4
    $region2: #{tpu_custom_call.1} parent=1 // loop_pre_header
      _
    $region3: #{tpu_custom_call.1} parent=1 // loop_header
      %s13 = sphi 0, %s17
      %p14 = scmp.ge.s32.totalorder %s13, 4
      %s23 = sphi 0, %s25
      %s26 = sphi 0, %s23
      %s27 = sphi 0, %s26
      %s43 = sphi 0, %s27
      %s49 = sphi 0, %s51
      %s52 = sphi 0, %s49
      %s53 = sphi 0, %s52
      %s69 = sphi 0, %s53
      %s73 = sphi 0, %s73
      %s75 = sphi 0, %s73
      %s76 = sphi 0, %s75
      %s90 = sphi 0, %s76
      %s96 = sphi 0, %s98
      %s99 = sphi 0, %s96
      %s100 = sphi 0, %s99
      %s116 = sphi 0, %s100
    $region4: #{tpu_custom_call.1} parent=1 // loop_header_branch
      %16 = sbr.rel (%p14) target = $region8
    $region5: #{tpu_custom_call.1} parent=1 // loop_body
      %s18 = ssub.s32 %s13, 1
      %s19 = ssub.s32 %s13, 2
      %s20 = sadd.s32 %s13, 1
      %s21 = ssub.s32 %s13, %s20
      %p22 = scmp.eq.s32.totalorder %s21, 0
      %s24 = sadd.s32 %s23, 1
      %s25 = scalar_select %p22, %s23, %s24
      %p28 = pneg %p22
      %p29 = scmp.eq.s32.totalorder %s13, 1
      %p30 = por %p28, %p29
      %p31 = scmp.ne.s32.totalorder %s23, %s26
      %p32 = scmp.eq.s32.totalorder %s13, 0
      %p33 = por %p31, %p32
      %p34 = scmp.ne.s32.totalorder %s23, %s26
      %p35 = scmp.eq.s32.totalorder %s18, 1
      %p36 = por %p34, %p35
      %p37 = scmp.ne.s32.totalorder %s26, %s27
      %p38 = scmp.eq.s32.totalorder %s18, 0
      %p39 = por %p37, %p38
      %p40 = scmp.ne.s32.totalorder %s26, %s27
      %p41 = scmp.eq.s32.totalorder %s19, 1
      %p42 = por %p40, %p41
      %p44 = scmp.ne.s32.totalorder %s27, %s43
      %p45 = scmp.eq.s32.totalorder %s19, 0
      %p46 = por %p44, %p45
      %s47 = ssub.s32 %s13, %s20
      %p48 = scmp.eq.s32.totalorder %s47, 0
      %s50 = sadd.s32 %s49, 1
      %s51 = scalar_select %p48, %s49, %s50
      %p54 = pneg %p48
      %p55 = scmp.eq.s32.totalorder %s13, 1
      %p56 = por %p54, %p55
      %p57 = scmp.ne.s32.totalorder %s49, %s52
      %p58 = scmp.eq.s32.totalorder %s13, 0
      %p59 = por %p57, %p58
      %p60 = scmp.ne.s32.totalorder %s49, %s52
      %p61 = scmp.eq.s32.totalorder %s18, 1
      %p62 = por %p60, %p61
      %p63 = scmp.ne.s32.totalorder %s52, %s53
      %p64 = scmp.eq.s32.totalorder %s18, 0
      %p65 = por %p63, %p64
      %p66 = scmp.ne.s32.totalorder %s52, %s53
      %p67 = scmp.eq.s32.totalorder %s19, 1
      %p68 = por %p66, %p67
      %p70 = scmp.ne.s32.totalorder %s53, %s69
      %p71 = scmp.eq.s32.totalorder %s19, 0
      %p72 = por %p70, %p71
      %s74 = sadd.s32 %s73, 1
      %p77 = scmp.eq.s32.totalorder %s13, 1
      %p78 = scmp.ne.s32.totalorder %s73, %s75
      %p79 = scmp.eq.s32.totalorder %s13, 0
      %p80 = por %p78, %p79
      %p81 = scmp.ne.s32.totalorder %s73, %s75
      %p82 = scmp.eq.s32.totalorder %s18, 1
      %p83 = por %p81, %p82
      %p84 = scmp.ne.s32.totalorder %s75, %s76
      %p85 = scmp.eq.s32.totalorder %s18, 0
      %p86 = por %p84, %p85
      %p87 = scmp.ne.s32.totalorder %s75, %s76
      %p88 = scmp.eq.s32.totalorder %s19, 1
      %p89 = por %p87, %p88
      %p91 = scmp.ne.s32.totalorder %s76, %s90
      %p92 = scmp.eq.s32.totalorder %s19, 0
      %p93 = por %p91, %p92
      %s94 = ssub.s32 %s13, %s20
      %p95 = scmp.eq.s32.totalorder %s94, 0
      %s97 = sadd.s32 %s96, 1
      %s98 = scalar_select %p95, %s96, %s97
      %p101 = pneg %p95
      %p102 = scmp.eq.s32.totalorder %s13, 1
      %p103 = por %p101, %p102
      %p104 = scmp.ne.s32.totalorder %s96, %s99
      %p105 = scmp.eq.s32.totalorder %s13, 0
      %p106 = por %p104, %p105
      %p107 = scmp.ne.s32.totalorder %s96, %s99
      %p108 = scmp.eq.s32.totalorder %s18, 1
      %p109 = por %p107, %p108
      %p110 = scmp.ne.s32.totalorder %s99, %s100
      %p111 = scmp.eq.s32.totalorder %s18, 0
      %p112 = por %p110, %p111
      %p113 = scmp.ne.s32.totalorder %s99, %s100
      %p114 = scmp.eq.s32.totalorder %s19, 1
      %p115 = por %p113, %p114
      %p117 = scmp.ne.s32.totalorder %s100, %s116
      %p118 = scmp.eq.s32.totalorder %s19, 0
      %p119 = por %p117, %p118
      %p120 = scmp.le.s32.totalorder 1, %s13
      %p121 = scmp.lt.s32.totalorder %s13, 3
      %p122 = pnand %p120, %p121
      %p123 = pneg %p122
      // Predicated region
      $region9: #{tpu_custom_call.1} parent=5 // pred_check
        _
      $region10: #{tpu_custom_call.1} parent=5 // pred_check_branch
        %125 = sbr.rel (%p122) target = $region12
      $region11: #{tpu_custom_call.1} parent=5 // pred_region
        %s126 = ssub.s32 %s13, 1
        // Predicated region
        $region13: #{tpu_custom_call.1} parent=11 // pred_check
          %p127 = pneg %p86
        $region14: #{tpu_custom_call.1} parent=11 // pred_check_branch
          %129 = sbr.rel (%p127) target = $region16
        $region15: #{tpu_custom_call.1} parent=11 // pred_region
          %s131 = ssub.s32 1024, 1024
          %132 = vsyncadd [#allocation5], %s131
          %s133 = sshll.u32 [#allocation4], 4
          %s134 = int_to_ptr.vmem [resolvable:$true] %s133
          %139 = dma.hbm_to_vmem [thread:$0]  %s2, 1024, %s134, [#allocation5], 128, 128, 8
        $region16: #{tpu_custom_call.1} parent=11 // pred_fallthru
          _
      $region12: #{tpu_custom_call.1} parent=5 // pred_fallthru
        _
      %p140 = scmp.lt.s32.totalorder %s13, 2
      // Predicated region
      $region17: #{tpu_custom_call.1} parent=5 // pred_check
        %p141 = pneg %p140
      $region18: #{tpu_custom_call.1} parent=5 // pred_check_branch
        %143 = sbr.rel (%p141) target = $region20
      $region19: #{tpu_custom_call.1} parent=5 // pred_region
        // Predicated region
        $region21: #{tpu_custom_call.1} parent=19 // pred_check
          %p144 = pneg %p33
        $region22: #{tpu_custom_call.1} parent=19 // pred_check_branch
          %146 = sbr.rel (%p144) target = $region24
        $region23: #{tpu_custom_call.1} parent=19 // pred_region
          %s147 = smul.u32 4, %s13
          %p148 = scmp.lt.s32.totalorder %s147, 7
          %s149 = scalar_select %p148, %s147, 7
          %s150 = smul.addr %s149, 2
          %s151 = smul.addr %s150, 2
          %s152 = scalar_lea.vmem %s0, %s151
          %s153 = smul.u32 4, %s13
        $region24: #{tpu_custom_call.1} parent=19 // pred_fallthru
          _
        // Predicated region
        $region25: #{tpu_custom_call.1} parent=19 // pred_check
          %p154 = pneg %p59
        $region26: #{tpu_custom_call.1} parent=19 // pred_check_branch
          %156 = sbr.rel (%p154) target = $region28
        $region27: #{tpu_custom_call.1} parent=19 // pred_region
          %s157 = smul.u32 4, %s13
          %p158 = scmp.lt.s32.totalorder %s157, 7
          %s159 = scalar_select %p158, %s157, 7
          %s160 = smul.addr %s159, 2
          %s161 = smul.addr %s160, 2
          %s162 = scalar_lea.vmem %s1, %s161
          %s163 = smul.u32 4, %s13
        $region28: #{tpu_custom_call.1} parent=19 // pred_fallthru
          _
      $region20: #{tpu_custom_call.1} parent=5 // pred_fallthru
        _
      %p164 = scmp.le.s32.totalorder 1, %s13
      %p165 = scmp.lt.s32.totalorder %s13, 3
      %p166 = pnand %p164, %p165
      %p167 = pneg %p166
      // Predicated region
      $region29: #{tpu_custom_call.1} parent=5 // pred_check
        _
      $region30: #{tpu_custom_call.1} parent=5 // pred_check_branch
        %169 = sbr.rel (%p166) target = $region32
      $region31: #{tpu_custom_call.1} parent=5 // pred_region
        %s170 = ssub.s32 %s13, 1
        // Predicated region
        $region33: #{tpu_custom_call.1} parent=31 // pred_check
          %p171 = pneg %p86
        $region34: #{tpu_custom_call.1} parent=31 // pred_check_branch
          %173 = sbr.rel (%p171) target = $region36
        $region35: #{tpu_custom_call.1} parent=31 // pred_region
          %174 = dma.done [#allocation5], 1024
        $region36: #{tpu_custom_call.1} parent=31 // pred_fallthru
          _
        %s175 = smul.u32 4, %s18
        %p176 = scmp.lt.s32.totalorder %s175, 7
        %s177 = scalar_select %p176, %s175, 7
        %s178 = smul.addr %s177, 2
        %s179 = smul.addr %s178, 2
        %s180 = scalar_lea.vmem %s0, %s179
        %p181 = pneg %p39
        %p182 = pneg %p36
        %s183 = smul.u32 4, %s18
        %p184 = scmp.lt.s32.totalorder %s183, 7
        %s185 = scalar_select %p184, %s183, 7
        %s186 = smul.addr %s185, 2
        %s187 = smul.addr %s186, 2
        %s188 = scalar_lea.vmem %s1, %s187
        %p189 = pneg %p65
        %p190 = pneg %p62
        %p191 = pneg %p86
        %p192 = pneg %p83
        %p193 = pneg %p112
        %p194 = pneg %p109
        %s195 = sand.u32 %s99, 1
        %s196 = scalar_lea.sflag [#allocation6], %s195
        %s197 = sand.u32 %s99, 1
        %s198 = smul.addr %s197, 16
        %s199 = scalar_lea.vmem [#allocation7], %s198
        %s200 = smul.u32 4, %s18
        %p201 = scmp.lt.s32.totalorder %s200, 7
        %s202 = scalar_select %p201, %s200, 7
        %s203 = smul.addr %s202, 2
        %s204 = smul.addr %s203, 2
        %s205 = scalar_lea.vmem %s0, %s204
        %s206 = smul.u32 4, %s18
        %s207 = smul.u32 4, %s18
        %p208 = scmp.lt.s32.totalorder %s207, 7
        %s209 = scalar_select %p208, %s207, 7
        %s210 = smul.addr %s209, 2
        %s211 = smul.addr %s210, 2
        %s212 = scalar_lea.vmem %s1, %s211
        %s213 = smul.u32 4, %s18
        %s214 = smul.u32 4, %s18
        %p215 = scmp.eq.s32.totalorder %s18, 0
        // Predicated region
        $region37: #{tpu_custom_call.1} parent=31 // pred_check
          %p216 = pneg %p215
        $region38: #{tpu_custom_call.1} parent=31 // pred_check_branch
          %218 = sbr.rel (%p216) target = $region40
        $region39: #{tpu_custom_call.1} parent=31 // pred_region
          %vm219 = vcmask 254976
          %220 = vst.msk [vmem:[#allocation2] sm:$0x3] %vm219, 0.0
          %221 = vst.msk [vmem:[#allocation2 + $0x2] sm:$0x3] %vm219, 0.0
          %222 = vst.msk [vmem:[#allocation3] sm:$0x3] %vm219, 0.0
          %223 = vst.msk [vmem:[#allocation3 + $0x2] sm:$0x3] %vm219, 0.0
        $region40: #{tpu_custom_call.1} parent=31 // pred_fallthru
          _
        %v224 = vld [vmem:[#allocation4] sm:$0xff]
        %v225 = vld [vmem:[#allocation4 + $0x8] sm:$0xff]
        %v226 = vld [vmem:[#allocation4 + $0x10] sm:$0xff]
        %v227 = vld [vmem:[#allocation4 + $0x18] sm:$0xff]
        %v228 = vld [vmem:[#allocation4 + $0x20] sm:$0xff]
        %v229 = vld [vmem:[#allocation4 + $0x28] sm:$0xff]
        %v230 = vld [vmem:[#allocation4 + $0x30] sm:$0xff]
        %v231 = vld [vmem:[#allocation4 + $0x38] sm:$0xff]
        %v232 = vld [vmem:[#allocation2] sm:$0x3]
        %v233 = vld [vmem:[#allocation2 + $0x2] sm:$0x3]
        %v234 = vld [vmem:[#allocation3] sm:$0x3]
        %v235 = vld [vmem:[#allocation3 + $0x2] sm:$0x3]
        %v236 = vld [vmem:[%s205] sm:$0x3]
        %v237 = vld [vmem:[%s205 + $0x2] sm:$0x3]
        %vm238 = vcmask 261120
        %v240 = vsel %vm238, %v232, 0
        %242 = vmatprep.subr.mxu0 0.0
        %243 = vmatpush1.msra.mxu0 0.0
        %244 = vmatprep.subr.mxu0 0.0
        %245 = vmatpush1.msra.mxu0 0.0
        %246 = vmatprep.subr.mxu0 0.0
        %247 = vmatpush1.msra.mxu0 0.0
        %248 = vmatprep.subr.mxu0 0.0
        %249 = vmatpush1.msra.mxu0 0.0
        %250 = vmatprep.subr.mxu0 0.0
        %251 = vmatpush1.msra.mxu0 0.0
        %252 = vmatprep.subr.mxu0 0.0
        %253 = vmatpush1.msra.mxu0 0.0
        %254 = vmatprep.subr.mxu0 0.0
        %255 = vmatpush1.msra.mxu0 0.0
        %256 = vmatprep.subr.mxu0 0.0
        %257 = vmatpush1.msra.mxu0 0.0
        %258 = vmatprep.subr.mxu0 0.0
        %259 = vmatpush1.msra.mxu0 0.0
        %260 = vmatprep.subr.mxu0 0.0
        %261 = vmatpush1.msra.mxu0 0.0
        %262 = vmatprep.subr.mxu0 0.0
        %263 = vmatpush1.msra.mxu0 0.0
        %264 = vmatprep.subr.mxu0 0.0
        %265 = vmatpush1.msra.mxu0 0.0
        %266 = vmatprep.subr.mxu0 0.0
        %267 = vmatpush1.msra.mxu0 %v227
        %268 = vmatprep.subr.mxu0 0.0
        %269 = vmatpush1.msra.mxu0 %v226
        %270 = vmatprep.subr.mxu0 0.0
        %271 = vmatpush1.msra.mxu0 %v225
        %272 = vmatprep.subr.mxu0 0.0
        %273 = vmatpush1.msra.mxu0 %v224
        %274 = vmatprep.subr.mxu0 0.0
        %275 = vmatpush2.msra.mxu0 0.0
        %276 = vmatprep.subr.mxu0 0.0
        %277 = vmatpush2.msra.mxu0 0.0
        %278 = vmatprep.subr.mxu0 0.0
        %279 = vmatpush2.msra.mxu0 0.0
        %280 = vmatprep.subr.mxu0 0.0
        %281 = vmatpush2.msra.mxu0 0.0
        %282 = vmatprep.subr.mxu0 0.0
        %283 = vmatpush2.msra.mxu0 0.0
        %284 = vmatprep.subr.mxu0 0.0
        %285 = vmatpush2.msra.mxu0 0.0
        %286 = vmatprep.subr.mxu0 0.0
        %287 = vmatpush2.msra.mxu0 0.0
        %288 = vmatprep.subr.mxu0 0.0
        %289 = vmatpush2.msra.mxu0 0.0
        %290 = vmatprep.subr.mxu0 0.0
        %291 = vmatpush2.msra.mxu0 0.0
        %292 = vmatprep.subr.mxu0 0.0
        %293 = vmatpush2.msra.mxu0 0.0
        %294 = vmatprep.subr.mxu0 0.0
        %295 = vmatpush2.msra.mxu0 0.0
        %296 = vmatprep.subr.mxu0 0.0
        %297 = vmatpush2.msra.mxu0 0.0
        %298 = vmatprep.subr.mxu0 0.0
        %299 = vmatpush2.msra.mxu0 0.0
        %300 = vmatprep.subr.mxu0 0.0
        %301 = vmatpush2.msra.mxu0 0.0
        %302 = vmatprep.subr.mxu0 0.0
        %303 = vmatpush2.msra.mxu0 0.0
        %304 = vmatprep.subr.mxu0 0.0
        %305 = vmatpush2.msra.mxu0 0.0
        %306 = vmatprep.mubr.f32.mxu0 0.0
        %307 = vmatmul.mubr.f32.gmra.mxu0 %v240
        %v308 = vpop.f32.mrf.mxu0
        %v309 = vadd.f32 0.0, %v308
        %v310 = vpop.f32.mrf.mxu0
        %311 = vdwg.mxu0
        %v313 = vsel %vm238, %v233, 0
        %315 = vmatprep.subr.mxu0 0.0
        %316 = vmatpush1.msra.mxu0 0.0
        %317 = vmatprep.subr.mxu0 0.0
        %318 = vmatpush1.msra.mxu0 0.0
        %319 = vmatprep.subr.mxu0 0.0
        %320 = vmatpush1.msra.mxu0 0.0
        %321 = vmatprep.subr.mxu0 0.0
        %322 = vmatpush1.msra.mxu0 0.0
        %323 = vmatprep.subr.mxu0 0.0
        %324 = vmatpush1.msra.mxu0 0.0
        %325 = vmatprep.subr.mxu0 0.0
        %326 = vmatpush1.msra.mxu0 0.0
        %327 = vmatprep.subr.mxu0 0.0
        %328 = vmatpush1.msra.mxu0 0.0
        %329 = vmatprep.subr.mxu0 0.0
        %330 = vmatpush1.msra.mxu0 0.0
        %331 = vmatprep.subr.mxu0 0.0
        %332 = vmatpush1.msra.mxu0 0.0
        %333 = vmatprep.subr.mxu0 0.0
        %334 = vmatpush1.msra.mxu0 0.0
        %335 = vmatprep.subr.mxu0 0.0
        %336 = vmatpush1.msra.mxu0 0.0
        %337 = vmatprep.subr.mxu0 0.0
        %338 = vmatpush1.msra.mxu0 0.0
        %339 = vmatprep.subr.mxu0 0.0
        %340 = vmatpush1.msra.mxu0 %v231
        %341 = vmatprep.subr.mxu0 0.0
        %342 = vmatpush1.msra.mxu0 %v230
        %343 = vmatprep.subr.mxu0 0.0
        %344 = vmatpush1.msra.mxu0 %v229
        %345 = vmatprep.subr.mxu0 0.0
        %346 = vmatpush1.msra.mxu0 %v228
        %347 = vmatprep.subr.mxu0 0.0
        %348 = vmatpush2.msra.mxu0 0.0
        %349 = vmatprep.subr.mxu0 0.0
        %350 = vmatpush2.msra.mxu0 0.0
        %351 = vmatprep.subr.mxu0 0.0
        %352 = vmatpush2.msra.mxu0 0.0
        %353 = vmatprep.subr.mxu0 0.0
        %354 = vmatpush2.msra.mxu0 0.0
        %355 = vmatprep.subr.mxu0 0.0
        %356 = vmatpush2.msra.mxu0 0.0
        %357 = vmatprep.subr.mxu0 0.0
        %358 = vmatpush2.msra.mxu0 0.0
        %359 = vmatprep.subr.mxu0 0.0
        %360 = vmatpush2.msra.mxu0 0.0
        %361 = vmatprep.subr.mxu0 0.0
        %362 = vmatpush2.msra.mxu0 0.0
        %363 = vmatprep.subr.mxu0 0.0
        %364 = vmatpush2.msra.mxu0 0.0
        %365 = vmatprep.subr.mxu0 0.0
        %366 = vmatpush2.msra.mxu0 0.0
        %367 = vmatprep.subr.mxu0 0.0
        %368 = vmatpush2.msra.mxu0 0.0
        %369 = vmatprep.subr.mxu0 0.0
        %370 = vmatpush2.msra.mxu0 0.0
        %371 = vmatprep.subr.mxu0 0.0
        %372 = vmatpush2.msra.mxu0 0.0
        %373 = vmatprep.subr.mxu0 0.0
        %374 = vmatpush2.msra.mxu0 0.0
        %375 = vmatprep.subr.mxu0 0.0
        %376 = vmatpush2.msra.mxu0 0.0
        %377 = vmatprep.subr.mxu0 0.0
        %378 = vmatpush2.msra.mxu0 0.0
        %379 = vmatprep.mubr.f32.mxu0 0.0
        %380 = vmatmul.mubr.f32.gmra.mxu0 %v313
        %v381 = vpop.f32.mrf.mxu0
        %v382 = vadd.f32 0.0, %v381
        %v383 = vpop.f32.mrf.mxu0
        %384 = vdwg.mxu0
        %v385 = vadd.f32 %v236, %v309
        %v386 = vadd.f32 %v237, %v382
        %v387 = vxor.u32 %v385, 2147483648
        %v388 = vxor.u32 %v386, 2147483648
        %v389 = vmul.f32 %v387, 1.442695
        %v390 = vpow.pop %v389
        %v391 = vmul.f32 %v388, 1.442695
        %v392 = vpow.pop %v391
        %v393 = vadd.f32 %v390, 1.0
        %v394 = vadd.f32 %v392, 1.0
        %v395 = vrcp.pop %v393
        %v396 = vmul.f32 1.0, %v395
        %v397 = vrcp.pop %v394
        %v398 = vmul.f32 1.0, %v397
        %v399 = vtanh.pop %v385
        %v400 = vtanh.pop %v386
        %403 = vrot.lane.b32.xlu0 %v234, 32
        %v404 = vpop.permute.xlu0 %403
        %405 = vrot.lane.b32.xlu0 %v235, 32
        %v406 = vpop.permute.xlu0 %405
        %v409 = vmul.f32 %v396, %v404
        %v410 = vmul.f32 %v398, %v406
        %413 = vrot.lane.b32.xlu0 %v399, 64
        %v414 = vpop.permute.xlu0 %413
        %415 = vrot.lane.b32.xlu0 %v400, 64
        %v416 = vpop.permute.xlu0 %415
        %v419 = vmul.f32 %v396, %v414
        %v420 = vmul.f32 %v398, %v416
        %423 = vrot.lane.b32.xlu0 %v419, 32
        %v424 = vpop.permute.xlu0 %423
        %425 = vrot.lane.b32.xlu0 %v420, 32
        %v426 = vpop.permute.xlu0 %425
        %v429 = vadd.f32 %v409, %v424
        %v430 = vadd.f32 %v410, %v426
        %v431 = vtanh.pop %v429
        %v432 = vtanh.pop %v430
        %435 = vrot.lane.b32.xlu0 %v431, 64
        %v436 = vpop.permute.xlu0 %435
        %437 = vrot.lane.b32.xlu0 %v432, 64
        %v438 = vpop.permute.xlu0 %437
        %v441 = vmul.f32 %v396, %v436
        %v442 = vmul.f32 %v398, %v438
        %v443 = vld [vmem:[%s212] sm:$0x3]
        %v444 = vld [vmem:[%s212 + $0x2] sm:$0x3]
        %v445 = vsub.f32 1.0, %v443
        %v446 = vsub.f32 1.0, %v444
        %448 = vset.pattern.permute.xlu0 0
        %449 = vperm.xlu0 %448, %v443
        %v450 = vpop.permute.xlu0 %449
        %453 = vset.pattern.permute.xlu0 0
        %454 = vperm.xlu0 %453, %v444
        %v455 = vpop.permute.xlu0 %454
        %v457 = vmul.f32 %v450, %v441
        %v458 = vmul.f32 %v455, %v442
        %461 = vrot.lane.b32.xlu0 %v457, 32
        %v462 = vpop.permute.xlu0 %461
        %463 = vrot.lane.b32.xlu0 %v458, 32
        %v464 = vpop.permute.xlu0 %463
        %vm467 = vcmask 254976
        %468 = vst.msk [vmem:[%s199] sm:$0x3] %vm467, %v462
        %469 = vst.msk [vmem:[%s199 + $0x2] sm:$0x3] %vm467, %v464
        %471 = vset.pattern.permute.xlu0 0
        %472 = vperm.xlu0 %471, %v445
        %v473 = vpop.permute.xlu0 %472
        %476 = vset.pattern.permute.xlu0 0
        %477 = vperm.xlu0 %476, %v446
        %v478 = vpop.permute.xlu0 %477
        %v480 = vmul.f32 %v473, %v232
        %v481 = vmul.f32 %v478, %v233
        %484 = vrot.lane.b32.xlu0 %v480, 96
        %v485 = vpop.permute.xlu0 %484
        %486 = vrot.lane.b32.xlu0 %v481, 96
        %v487 = vpop.permute.xlu0 %486
        %v490 = vadd.f32 %v457, %v485
        %v491 = vadd.f32 %v458, %v487
        %v492 = vmul.f32 %v450, %v429
        %v493 = vmul.f32 %v455, %v430
        %v494 = vmul.f32 %v473, %v234
        %v495 = vmul.f32 %v478, %v235
        %498 = vrot.lane.b32.xlu0 %v494, 32
        %v499 = vpop.permute.xlu0 %498
        %500 = vrot.lane.b32.xlu0 %v495, 32
        %v501 = vpop.permute.xlu0 %500
        %v504 = vadd.f32 %v492, %v499
        %v505 = vadd.f32 %v493, %v501
        %s506 = scalar_lea.vmem %s205, 4
        %v507 = vld [vmem:[%s506] sm:$0x3]
        %v508 = vld [vmem:[%s506 + $0x2] sm:$0x3]
        %510 = vrot.lane.b32.xlu0 %v490, 32
        %v511 = vpop.permute.xlu0 %510
        %v512 = vsel %vm238, %v511, 0
        %514 = vmatprep.subr.mxu0 0.0
        %515 = vmatpush1.msra.mxu0 0.0
        %516 = vmatprep.subr.mxu0 0.0
        %517 = vmatpush1.msra.mxu0 0.0
        %518 = vmatprep.subr.mxu0 0.0
        %519 = vmatpush1.msra.mxu0 0.0
        %520 = vmatprep.subr.mxu0 0.0
        %521 = vmatpush1.msra.mxu0 0.0
        %522 = vmatprep.subr.mxu0 0.0
        %523 = vmatpush1.msra.mxu0 0.0
        %524 = vmatprep.subr.mxu0 0.0
        %525 = vmatpush1.msra.mxu0 0.0
        %526 = vmatprep.subr.mxu0 0.0
        %527 = vmatpush1.msra.mxu0 0.0
        %528 = vmatprep.subr.mxu0 0.0
        %529 = vmatpush1.msra.mxu0 0.0
        %530 = vmatprep.subr.mxu0 0.0
        %531 = vmatpush1.msra.mxu0 0.0
        %532 = vmatprep.subr.mxu0 0.0
        %533 = vmatpush1.msra.mxu0 0.0
        %534 = vmatprep.subr.mxu0 0.0
        %535 = vmatpush1.msra.mxu0 0.0
        %536 = vmatprep.subr.mxu0 0.0
        %537 = vmatpush1.msra.mxu0 0.0
        %538 = vmatprep.subr.mxu0 0.0
        %539 = vmatpush1.msra.mxu0 %v227
        %540 = vmatprep.subr.mxu0 0.0
        %541 = vmatpush1.msra.mxu0 %v226
        %542 = vmatprep.subr.mxu0 0.0
        %543 = vmatpush1.msra.mxu0 %v225
        %544 = vmatprep.subr.mxu0 0.0
        %545 = vmatpush1.msra.mxu0 %v224
        %546 = vmatprep.subr.mxu0 0.0
        %547 = vmatpush2.msra.mxu0 0.0
        %548 = vmatprep.subr.mxu0 0.0
        %549 = vmatpush2.msra.mxu0 0.0
        %550 = vmatprep.subr.mxu0 0.0
        %551 = vmatpush2.msra.mxu0 0.0
        %552 = vmatprep.subr.mxu0 0.0
        %553 = vmatpush2.msra.mxu0 0.0
        %554 = vmatprep.subr.mxu0 0.0
        %555 = vmatpush2.msra.mxu0 0.0
        %556 = vmatprep.subr.mxu0 0.0
        %557 = vmatpush2.msra.mxu0 0.0
        %558 = vmatprep.subr.mxu0 0.0
        %559 = vmatpush2.msra.mxu0 0.0
        %560 = vmatprep.subr.mxu0 0.0
        %561 = vmatpush2.msra.mxu0 0.0
        %562 = vmatprep.subr.mxu0 0.0
        %563 = vmatpush2.msra.mxu0 0.0
        %564 = vmatprep.subr.mxu0 0.0
        %565 = vmatpush2.msra.mxu0 0.0
        %566 = vmatprep.subr.mxu0 0.0
        %567 = vmatpush2.msra.mxu0 0.0
        %568 = vmatprep.subr.mxu0 0.0
        %569 = vmatpush2.msra.mxu0 0.0
        %570 = vmatprep.subr.mxu0 0.0
        %571 = vmatpush2.msra.mxu0 0.0
        %572 = vmatprep.subr.mxu0 0.0
        %573 = vmatpush2.msra.mxu0 0.0
        %574 = vmatprep.subr.mxu0 0.0
        %575 = vmatpush2.msra.mxu0 0.0
        %576 = vmatprep.subr.mxu0 0.0
        %577 = vmatpush2.msra.mxu0 0.0
        %578 = vmatprep.mubr.f32.mxu0 0.0
        %579 = vmatmul.mubr.f32.gmra.mxu0 %v512
        %v580 = vpop.f32.mrf.mxu0
        %v581 = vadd.f32 0.0, %v580
        %v582 = vpop.f32.mrf.mxu0
        %583 = vdwg.mxu0
        %585 = vrot.lane.b32.xlu0 %v491, 32
        %v586 = vpop.permute.xlu0 %585
        %v587 = vsel %vm238, %v586, 0
        %589 = vmatprep.subr.mxu0 0.0
        %590 = vmatpush1.msra.mxu0 0.0
        %591 = vmatprep.subr.mxu0 0.0
        %592 = vmatpush1.msra.mxu0 0.0
        %593 = vmatprep.subr.mxu0 0.0
        %594 = vmatpush1.msra.mxu0 0.0
        %595 = vmatprep.subr.mxu0 0.0
        %596 = vmatpush1.msra.mxu0 0.0
        %597 = vmatprep.subr.mxu0 0.0
        %598 = vmatpush1.msra.mxu0 0.0
        %599 = vmatprep.subr.mxu0 0.0
        %600 = vmatpush1.msra.mxu0 0.0
        %601 = vmatprep.subr.mxu0 0.0
        %602 = vmatpush1.msra.mxu0 0.0
        %603 = vmatprep.subr.mxu0 0.0
        %604 = vmatpush1.msra.mxu0 0.0
        %605 = vmatprep.subr.mxu0 0.0
        %606 = vmatpush1.msra.mxu0 0.0
        %607 = vmatprep.subr.mxu0 0.0
        %608 = vmatpush1.msra.mxu0 0.0
        %609 = vmatprep.subr.mxu0 0.0
        %610 = vmatpush1.msra.mxu0 0.0
        %611 = vmatprep.subr.mxu0 0.0
        %612 = vmatpush1.msra.mxu0 0.0
        %613 = vmatprep.subr.mxu0 0.0
        %614 = vmatpush1.msra.mxu0 %v231
        %615 = vmatprep.subr.mxu0 0.0
        %616 = vmatpush1.msra.mxu0 %v230
        %617 = vmatprep.subr.mxu0 0.0
        %618 = vmatpush1.msra.mxu0 %v229
        %619 = vmatprep.subr.mxu0 0.0
        %620 = vmatpush1.msra.mxu0 %v228
        %621 = vmatprep.subr.mxu0 0.0
        %622 = vmatpush2.msra.mxu0 0.0
        %623 = vmatprep.subr.mxu0 0.0
        %624 = vmatpush2.msra.mxu0 0.0
        %625 = vmatprep.subr.mxu0 0.0
        %626 = vmatpush2.msra.mxu0 0.0
        %627 = vmatprep.subr.mxu0 0.0
        %628 = vmatpush2.msra.mxu0 0.0
        %629 = vmatprep.subr.mxu0 0.0
        %630 = vmatpush2.msra.mxu0 0.0
        %631 = vmatprep.subr.mxu0 0.0
        %632 = vmatpush2.msra.mxu0 0.0
        %633 = vmatprep.subr.mxu0 0.0
        %634 = vmatpush2.msra.mxu0 0.0
        %635 = vmatprep.subr.mxu0 0.0
        %636 = vmatpush2.msra.mxu0 0.0
        %637 = vmatprep.subr.mxu0 0.0
        %638 = vmatpush2.msra.mxu0 0.0
        %639 = vmatprep.subr.mxu0 0.0
        %640 = vmatpush2.msra.mxu0 0.0
        %641 = vmatprep.subr.mxu0 0.0
        %642 = vmatpush2.msra.mxu0 0.0
        %643 = vmatprep.subr.mxu0 0.0
        %644 = vmatpush2.msra.mxu0 0.0
        %645 = vmatprep.subr.mxu0 0.0
        %646 = vmatpush2.msra.mxu0 0.0
        %647 = vmatprep.subr.mxu0 0.0
        %648 = vmatpush2.msra.mxu0 0.0
        %649 = vmatprep.subr.mxu0 0.0
        %650 = vmatpush2.msra.mxu0 0.0
        %651 = vmatprep.subr.mxu0 0.0
        %652 = vmatpush2.msra.mxu0 0.0
        %653 = vmatprep.mubr.f32.mxu0 0.0
        %654 = vmatmul.mubr.f32.gmra.mxu0 %v587
        %v655 = vpop.f32.mrf.mxu0
        %v656 = vadd.f32 0.0, %v655
        %v657 = vpop.f32.mrf.mxu0
        %658 = vdwg.mxu0
        %v659 = vadd.f32 %v507, %v581
        %v660 = vadd.f32 %v508, %v656
        %v661 = vxor.u32 %v659, 2147483648
        %v662 = vxor.u32 %v660, 2147483648
        %v663 = vmul.f32 %v661, 1.442695
        %v664 = vpow.pop %v663
        %v665 = vmul.f32 %v662, 1.442695
        %v666 = vpow.pop %v665
        %v667 = vadd.f32 %v664, 1.0
        %v668 = vadd.f32 %v666, 1.0
        %v669 = vrcp.pop %v667
        %v670 = vmul.f32 1.0, %v669
        %v671 = vrcp.pop %v668
        %v672 = vmul.f32 1.0, %v671
        %v673 = vtanh.pop %v659
        %v674 = vtanh.pop %v660
        %v675 = vmul.f32 %v670, %v504
        %v676 = vmul.f32 %v672, %v505
        %679 = vrot.lane.b32.xlu0 %v673, 64
        %v680 = vpop.permute.xlu0 %679
        %681 = vrot.lane.b32.xlu0 %v674, 64
        %v682 = vpop.permute.xlu0 %681
        %v685 = vmul.f32 %v670, %v680
        %v686 = vmul.f32 %v672, %v682
        %689 = vrot.lane.b32.xlu0 %v685, 32
        %v690 = vpop.permute.xlu0 %689
        %691 = vrot.lane.b32.xlu0 %v686, 32
        %v692 = vpop.permute.xlu0 %691
        %v695 = vadd.f32 %v675, %v690
        %v696 = vadd.f32 %v676, %v692
        %v697 = vtanh.pop %v695
        %v698 = vtanh.pop %v696
        %701 = vrot.lane.b32.xlu0 %v697, 64
        %v702 = vpop.permute.xlu0 %701
        %703 = vrot.lane.b32.xlu0 %v698, 64
        %v704 = vpop.permute.xlu0 %703
        %v707 = vmul.f32 %v670, %v702
        %v708 = vmul.f32 %v672, %v704
        %s709 = scalar_lea.vmem %s212, 4
        %v710 = vld [vmem:[%s709] sm:$0x3]
        %v711 = vld [vmem:[%s709 + $0x2] sm:$0x3]
        %v712 = vsub.f32 1.0, %v710
        %v713 = vsub.f32 1.0, %v711
        %715 = vset.pattern.permute.xlu0 0
        %716 = vperm.xlu0 %715, %v710
        %v717 = vpop.permute.xlu0 %716
        %720 = vset.pattern.permute.xlu0 0
        %721 = vperm.xlu0 %720, %v711
        %v722 = vpop.permute.xlu0 %721
        %v724 = vmul.f32 %v717, %v707
        %v725 = vmul.f32 %v722, %v708
        %728 = vrot.lane.b32.xlu0 %v724, 32
        %v729 = vpop.permute.xlu0 %728
        %730 = vrot.lane.b32.xlu0 %v725, 32
        %v731 = vpop.permute.xlu0 %730
        %s734 = scalar_lea.vmem %s199, 4 [#allocation7]
        %735 = vst.msk [vmem:[%s734] sm:$0x3] %vm467, %v729
        %736 = vst.msk [vmem:[%s734 + $0x2] sm:$0x3] %vm467, %v731
        %738 = vset.pattern.permute.xlu0 0
        %739 = vperm.xlu0 %738, %v712
        %v740 = vpop.permute.xlu0 %739
        %743 = vset.pattern.permute.xlu0 0
        %744 = vperm.xlu0 %743, %v713
        %v745 = vpop.permute.xlu0 %744
        %v747 = vmul.f32 %v740, %v490
        %v748 = vmul.f32 %v745, %v491
        %v749 = vadd.f32 %v724, %v747
        %v750 = vadd.f32 %v725, %v748
        %v751 = vmul.f32 %v717, %v695
        %v752 = vmul.f32 %v722, %v696
        %v753 = vmul.f32 %v740, %v504
        %v754 = vmul.f32 %v745, %v505
        %v755 = vadd.f32 %v751, %v753
        %v756 = vadd.f32 %v752, %v754
        %s757 = scalar_lea.vmem %s205, 8
        %v758 = vld [vmem:[%s757] sm:$0x3]
        %v759 = vld [vmem:[%s757 + $0x2] sm:$0x3]
        %761 = vrot.lane.b32.xlu0 %v749, 32
        %v762 = vpop.permute.xlu0 %761
        %v763 = vsel %vm238, %v762, 0
        %765 = vmatprep.subr.mxu0 0.0
        %766 = vmatpush1.msra.mxu0 0.0
        %767 = vmatprep.subr.mxu0 0.0
        %768 = vmatpush1.msra.mxu0 0.0
        %769 = vmatprep.subr.mxu0 0.0
        %770 = vmatpush1.msra.mxu0 0.0
        %771 = vmatprep.subr.mxu0 0.0
        %772 = vmatpush1.msra.mxu0 0.0
        %773 = vmatprep.subr.mxu0 0.0
        %774 = vmatpush1.msra.mxu0 0.0
        %775 = vmatprep.subr.mxu0 0.0
        %776 = vmatpush1.msra.mxu0 0.0
        %777 = vmatprep.subr.mxu0 0.0
        %778 = vmatpush1.msra.mxu0 0.0
        %779 = vmatprep.subr.mxu0 0.0
        %780 = vmatpush1.msra.mxu0 0.0
        %781 = vmatprep.subr.mxu0 0.0
        %782 = vmatpush1.msra.mxu0 0.0
        %783 = vmatprep.subr.mxu0 0.0
        %784 = vmatpush1.msra.mxu0 0.0
        %785 = vmatprep.subr.mxu0 0.0
        %786 = vmatpush1.msra.mxu0 0.0
        %787 = vmatprep.subr.mxu0 0.0
        %788 = vmatpush1.msra.mxu0 0.0
        %789 = vmatprep.subr.mxu0 0.0
        %790 = vmatpush1.msra.mxu0 %v227
        %791 = vmatprep.subr.mxu0 0.0
        %792 = vmatpush1.msra.mxu0 %v226
        %793 = vmatprep.subr.mxu0 0.0
        %794 = vmatpush1.msra.mxu0 %v225
        %795 = vmatprep.subr.mxu0 0.0
        %796 = vmatpush1.msra.mxu0 %v224
        %797 = vmatprep.subr.mxu0 0.0
        %798 = vmatpush2.msra.mxu0 0.0
        %799 = vmatprep.subr.mxu0 0.0
        %800 = vmatpush2.msra.mxu0 0.0
        %801 = vmatprep.subr.mxu0 0.0
        %802 = vmatpush2.msra.mxu0 0.0
        %803 = vmatprep.subr.mxu0 0.0
        %804 = vmatpush2.msra.mxu0 0.0
        %805 = vmatprep.subr.mxu0 0.0
        %806 = vmatpush2.msra.mxu0 0.0
        %807 = vmatprep.subr.mxu0 0.0
        %808 = vmatpush2.msra.mxu0 0.0
        %809 = vmatprep.subr.mxu0 0.0
        %810 = vmatpush2.msra.mxu0 0.0
        %811 = vmatprep.subr.mxu0 0.0
        %812 = vmatpush2.msra.mxu0 0.0
        %813 = vmatprep.subr.mxu0 0.0
        %814 = vmatpush2.msra.mxu0 0.0
        %815 = vmatprep.subr.mxu0 0.0
        %816 = vmatpush2.msra.mxu0 0.0
        %817 = vmatprep.subr.mxu0 0.0
        %818 = vmatpush2.msra.mxu0 0.0
        %819 = vmatprep.subr.mxu0 0.0
        %820 = vmatpush2.msra.mxu0 0.0
        %821 = vmatprep.subr.mxu0 0.0
        %822 = vmatpush2.msra.mxu0 0.0
        %823 = vmatprep.subr.mxu0 0.0
        %824 = vmatpush2.msra.mxu0 0.0
        %825 = vmatprep.subr.mxu0 0.0
        %826 = vmatpush2.msra.mxu0 0.0
        %827 = vmatprep.subr.mxu0 0.0
        %828 = vmatpush2.msra.mxu0 0.0
        %829 = vmatprep.mubr.f32.mxu0 0.0
        %830 = vmatmul.mubr.f32.gmra.mxu0 %v763
        %v831 = vpop.f32.mrf.mxu0
        %v832 = vadd.f32 0.0, %v831
        %v833 = vpop.f32.mrf.mxu0
        %834 = vdwg.mxu0
        %836 = vrot.lane.b32.xlu0 %v750, 32
        %v837 = vpop.permute.xlu0 %836
        %v838 = vsel %vm238, %v837, 0
        %840 = vmatprep.subr.mxu0 0.0
        %841 = vmatpush1.msra.mxu0 0.0
        %842 = vmatprep.subr.mxu0 0.0
        %843 = vmatpush1.msra.mxu0 0.0
        %844 = vmatprep.subr.mxu0 0.0
        %845 = vmatpush1.msra.mxu0 0.0
        %846 = vmatprep.subr.mxu0 0.0
        %847 = vmatpush1.msra.mxu0 0.0
        %848 = vmatprep.subr.mxu0 0.0
        %849 = vmatpush1.msra.mxu0 0.0
        %850 = vmatprep.subr.mxu0 0.0
        %851 = vmatpush1.msra.mxu0 0.0
        %852 = vmatprep.subr.mxu0 0.0
        %853 = vmatpush1.msra.mxu0 0.0
        %854 = vmatprep.subr.mxu0 0.0
        %855 = vmatpush1.msra.mxu0 0.0
        %856 = vmatprep.subr.mxu0 0.0
        %857 = vmatpush1.msra.mxu0 0.0
        %858 = vmatprep.subr.mxu0 0.0
        %859 = vmatpush1.msra.mxu0 0.0
        %860 = vmatprep.subr.mxu0 0.0
        %861 = vmatpush1.msra.mxu0 0.0
        %862 = vmatprep.subr.mxu0 0.0
        %863 = vmatpush1.msra.mxu0 0.0
        %864 = vmatprep.subr.mxu0 0.0
        %865 = vmatpush1.msra.mxu0 %v231
        %866 = vmatprep.subr.mxu0 0.0
        %867 = vmatpush1.msra.mxu0 %v230
        %868 = vmatprep.subr.mxu0 0.0
        %869 = vmatpush1.msra.mxu0 %v229
        %870 = vmatprep.subr.mxu0 0.0
        %871 = vmatpush1.msra.mxu0 %v228
        %872 = vmatprep.subr.mxu0 0.0
        %873 = vmatpush2.msra.mxu0 0.0
        %874 = vmatprep.subr.mxu0 0.0
        %875 = vmatpush2.msra.mxu0 0.0
        %876 = vmatprep.subr.mxu0 0.0
        %877 = vmatpush2.msra.mxu0 0.0
        %878 = vmatprep.subr.mxu0 0.0
        %879 = vmatpush2.msra.mxu0 0.0
        %880 = vmatprep.subr.mxu0 0.0
        %881 = vmatpush2.msra.mxu0 0.0
        %882 = vmatprep.subr.mxu0 0.0
        %883 = vmatpush2.msra.mxu0 0.0
        %884 = vmatprep.subr.mxu0 0.0
        %885 = vmatpush2.msra.mxu0 0.0
        %886 = vmatprep.subr.mxu0 0.0
        %887 = vmatpush2.msra.mxu0 0.0
        %888 = vmatprep.subr.mxu0 0.0
        %889 = vmatpush2.msra.mxu0 0.0
        %890 = vmatprep.subr.mxu0 0.0
        %891 = vmatpush2.msra.mxu0 0.0
        %892 = vmatprep.subr.mxu0 0.0
        %893 = vmatpush2.msra.mxu0 0.0
        %894 = vmatprep.subr.mxu0 0.0
        %895 = vmatpush2.msra.mxu0 0.0
        %896 = vmatprep.subr.mxu0 0.0
        %897 = vmatpush2.msra.mxu0 0.0
        %898 = vmatprep.subr.mxu0 0.0
        %899 = vmatpush2.msra.mxu0 0.0
        %900 = vmatprep.subr.mxu0 0.0
        %901 = vmatpush2.msra.mxu0 0.0
        %902 = vmatprep.subr.mxu0 0.0
        %903 = vmatpush2.msra.mxu0 0.0
        %904 = vmatprep.mubr.f32.mxu0 0.0
        %905 = vmatmul.mubr.f32.gmra.mxu0 %v838
        %v906 = vpop.f32.mrf.mxu0
        %v907 = vadd.f32 0.0, %v906
        %v908 = vpop.f32.mrf.mxu0
        %909 = vdwg.mxu0
        %v910 = vadd.f32 %v758, %v832
        %v911 = vadd.f32 %v759, %v907
        %v912 = vxor.u32 %v910, 2147483648
        %v913 = vxor.u32 %v911, 2147483648
        %v914 = vmul.f32 %v912, 1.442695
        %v915 = vpow.pop %v914
        %v916 = vmul.f32 %v913, 1.442695
        %v917 = vpow.pop %v916
        %v918 = vadd.f32 %v915, 1.0
        %v919 = vadd.f32 %v917, 1.0
        %v920 = vrcp.pop %v918
        %v921 = vmul.f32 1.0, %v920
        %v922 = vrcp.pop %v919
        %v923 = vmul.f32 1.0, %v922
        %v924 = vtanh.pop %v910
        %v925 = vtanh.pop %v911
        %v926 = vmul.f32 %v921, %v755
        %v927 = vmul.f32 %v923, %v756
        %930 = vrot.lane.b32.xlu0 %v924, 64
        %v931 = vpop.permute.xlu0 %930
        %932 = vrot.lane.b32.xlu0 %v925, 64
        %v933 = vpop.permute.xlu0 %932
        %v936 = vmul.f32 %v921, %v931
        %v937 = vmul.f32 %v923, %v933
        %940 = vrot.lane.b32.xlu0 %v936, 32
        %v941 = vpop.permute.xlu0 %940
        %942 = vrot.lane.b32.xlu0 %v937, 32
        %v943 = vpop.permute.xlu0 %942
        %v946 = vadd.f32 %v926, %v941
        %v947 = vadd.f32 %v927, %v943
        %v948 = vtanh.pop %v946
        %v949 = vtanh.pop %v947
        %952 = vrot.lane.b32.xlu0 %v948, 64
        %v953 = vpop.permute.xlu0 %952
        %954 = vrot.lane.b32.xlu0 %v949, 64
        %v955 = vpop.permute.xlu0 %954
        %v958 = vmul.f32 %v921, %v953
        %v959 = vmul.f32 %v923, %v955
        %s960 = scalar_lea.vmem %s212, 8
        %v961 = vld [vmem:[%s960] sm:$0x3]
        %v962 = vld [vmem:[%s960 + $0x2] sm:$0x3]
        %v963 = vsub.f32 1.0, %v961
        %v964 = vsub.f32 1.0, %v962
        %966 = vset.pattern.permute.xlu0 0
        %967 = vperm.xlu0 %966, %v961
        %v968 = vpop.permute.xlu0 %967
        %971 = vset.pattern.permute.xlu0 0
        %972 = vperm.xlu0 %971, %v962
        %v973 = vpop.permute.xlu0 %972
        %v975 = vmul.f32 %v968, %v958
        %v976 = vmul.f32 %v973, %v959
        %979 = vrot.lane.b32.xlu0 %v975, 32
        %v980 = vpop.permute.xlu0 %979
        %981 = vrot.lane.b32.xlu0 %v976, 32
        %v982 = vpop.permute.xlu0 %981
        %s985 = scalar_lea.vmem %s199, 8 [#allocation7]
        %986 = vst.msk [vmem:[%s985] sm:$0x3] %vm467, %v980
        %987 = vst.msk [vmem:[%s985 + $0x2] sm:$0x3] %vm467, %v982
        %989 = vset.pattern.permute.xlu0 0
        %990 = vperm.xlu0 %989, %v963
        %v991 = vpop.permute.xlu0 %990
        %994 = vset.pattern.permute.xlu0 0
        %995 = vperm.xlu0 %994, %v964
        %v996 = vpop.permute.xlu0 %995
        %v998 = vmul.f32 %v991, %v749
        %v999 = vmul.f32 %v996, %v750
        %v1000 = vadd.f32 %v975, %v998
        %v1001 = vadd.f32 %v976, %v999
        %v1002 = vmul.f32 %v968, %v946
        %v1003 = vmul.f32 %v973, %v947
        %v1004 = vmul.f32 %v991, %v755
        %v1005 = vmul.f32 %v996, %v756
        %v1006 = vadd.f32 %v1002, %v1004
        %v1007 = vadd.f32 %v1003, %v1005
        %s1008 = scalar_lea.vmem %s205, 12
        %v1009 = vld [vmem:[%s1008] sm:$0x3]
        %v1010 = vld [vmem:[%s1008 + $0x2] sm:$0x3]
        %1012 = vrot.lane.b32.xlu0 %v1000, 32
        %v1013 = vpop.permute.xlu0 %1012
        %v1014 = vsel %vm238, %v1013, 0
        %1016 = vmatprep.subr.mxu0 0.0
        %1017 = vmatpush1.msra.mxu0 0.0
        %1018 = vmatprep.subr.mxu0 0.0
        %1019 = vmatpush1.msra.mxu0 0.0
        %1020 = vmatprep.subr.mxu0 0.0
        %1021 = vmatpush1.msra.mxu0 0.0
        %1022 = vmatprep.subr.mxu0 0.0
        %1023 = vmatpush1.msra.mxu0 0.0
        %1024 = vmatprep.subr.mxu0 0.0
        %1025 = vmatpush1.msra.mxu0 0.0
        %1026 = vmatprep.subr.mxu0 0.0
        %1027 = vmatpush1.msra.mxu0 0.0
        %1028 = vmatprep.subr.mxu0 0.0
        %1029 = vmatpush1.msra.mxu0 0.0
        %1030 = vmatprep.subr.mxu0 0.0
        %1031 = vmatpush1.msra.mxu0 0.0
        %1032 = vmatprep.subr.mxu0 0.0
        %1033 = vmatpush1.msra.mxu0 0.0
        %1034 = vmatprep.subr.mxu0 0.0
        %1035 = vmatpush1.msra.mxu0 0.0
        %1036 = vmatprep.subr.mxu0 0.0
        %1037 = vmatpush1.msra.mxu0 0.0
        %1038 = vmatprep.subr.mxu0 0.0
        %1039 = vmatpush1.msra.mxu0 0.0
        %1040 = vmatprep.subr.mxu0 0.0
        %1041 = vmatpush1.msra.mxu0 %v227
        %1042 = vmatprep.subr.mxu0 0.0
        %1043 = vmatpush1.msra.mxu0 %v226
        %1044 = vmatprep.subr.mxu0 0.0
        %1045 = vmatpush1.msra.mxu0 %v225
        %1046 = vmatprep.subr.mxu0 0.0
        %1047 = vmatpush1.msra.mxu0 %v224
        %1048 = vmatprep.subr.mxu0 0.0
        %1049 = vmatpush2.msra.mxu0 0.0
        %1050 = vmatprep.subr.mxu0 0.0
        %1051 = vmatpush2.msra.mxu0 0.0
        %1052 = vmatprep.subr.mxu0 0.0
        %1053 = vmatpush2.msra.mxu0 0.0
        %1054 = vmatprep.subr.mxu0 0.0
        %1055 = vmatpush2.msra.mxu0 0.0
        %1056 = vmatprep.subr.mxu0 0.0
        %1057 = vmatpush2.msra.mxu0 0.0
        %1058 = vmatprep.subr.mxu0 0.0
        %1059 = vmatpush2.msra.mxu0 0.0
        %1060 = vmatprep.subr.mxu0 0.0
        %1061 = vmatpush2.msra.mxu0 0.0
        %1062 = vmatprep.subr.mxu0 0.0
        %1063 = vmatpush2.msra.mxu0 0.0
        %1064 = vmatprep.subr.mxu0 0.0
        %1065 = vmatpush2.msra.mxu0 0.0
        %1066 = vmatprep.subr.mxu0 0.0
        %1067 = vmatpush2.msra.mxu0 0.0
        %1068 = vmatprep.subr.mxu0 0.0
        %1069 = vmatpush2.msra.mxu0 0.0
        %1070 = vmatprep.subr.mxu0 0.0
        %1071 = vmatpush2.msra.mxu0 0.0
        %1072 = vmatprep.subr.mxu0 0.0
        %1073 = vmatpush2.msra.mxu0 0.0
        %1074 = vmatprep.subr.mxu0 0.0
        %1075 = vmatpush2.msra.mxu0 0.0
        %1076 = vmatprep.subr.mxu0 0.0
        %1077 = vmatpush2.msra.mxu0 0.0
        %1078 = vmatprep.subr.mxu0 0.0
        %1079 = vmatpush2.msra.mxu0 0.0
        %1080 = vmatprep.mubr.f32.mxu0 0.0
        %1081 = vmatmul.mubr.f32.gmra.mxu0 %v1014
        %v1082 = vpop.f32.mrf.mxu0
        %v1083 = vadd.f32 0.0, %v1082
        %v1084 = vpop.f32.mrf.mxu0
        %1085 = vdwg.mxu0
        %1087 = vrot.lane.b32.xlu0 %v1001, 32
        %v1088 = vpop.permute.xlu0 %1087
        %v1089 = vsel %vm238, %v1088, 0
        %1091 = vmatprep.subr.mxu0 0.0
        %1092 = vmatpush1.msra.mxu0 0.0
        %1093 = vmatprep.subr.mxu0 0.0
        %1094 = vmatpush1.msra.mxu0 0.0
        %1095 = vmatprep.subr.mxu0 0.0
        %1096 = vmatpush1.msra.mxu0 0.0
        %1097 = vmatprep.subr.mxu0 0.0
        %1098 = vmatpush1.msra.mxu0 0.0
        %1099 = vmatprep.subr.mxu0 0.0
        %1100 = vmatpush1.msra.mxu0 0.0
        %1101 = vmatprep.subr.mxu0 0.0
        %1102 = vmatpush1.msra.mxu0 0.0
        %1103 = vmatprep.subr.mxu0 0.0
        %1104 = vmatpush1.msra.mxu0 0.0
        %1105 = vmatprep.subr.mxu0 0.0
        %1106 = vmatpush1.msra.mxu0 0.0
        %1107 = vmatprep.subr.mxu0 0.0
        %1108 = vmatpush1.msra.mxu0 0.0
        %1109 = vmatprep.subr.mxu0 0.0
        %1110 = vmatpush1.msra.mxu0 0.0
        %1111 = vmatprep.subr.mxu0 0.0
        %1112 = vmatpush1.msra.mxu0 0.0
        %1113 = vmatprep.subr.mxu0 0.0
        %1114 = vmatpush1.msra.mxu0 0.0
        %1115 = vmatprep.subr.mxu0 0.0
        %1116 = vmatpush1.msra.mxu0 %v231
        %1117 = vmatprep.subr.mxu0 0.0
        %1118 = vmatpush1.msra.mxu0 %v230
        %1119 = vmatprep.subr.mxu0 0.0
        %1120 = vmatpush1.msra.mxu0 %v229
        %1121 = vmatprep.subr.mxu0 0.0
        %1122 = vmatpush1.msra.mxu0 %v228
        %1123 = vmatprep.subr.mxu0 0.0
        %1124 = vmatpush2.msra.mxu0 0.0
        %1125 = vmatprep.subr.mxu0 0.0
        %1126 = vmatpush2.msra.mxu0 0.0
        %1127 = vmatprep.subr.mxu0 0.0
        %1128 = vmatpush2.msra.mxu0 0.0
        %1129 = vmatprep.subr.mxu0 0.0
        %1130 = vmatpush2.msra.mxu0 0.0
        %1131 = vmatprep.subr.mxu0 0.0
        %1132 = vmatpush2.msra.mxu0 0.0
        %1133 = vmatprep.subr.mxu0 0.0
        %1134 = vmatpush2.msra.mxu0 0.0
        %1135 = vmatprep.subr.mxu0 0.0
        %1136 = vmatpush2.msra.mxu0 0.0
        %1137 = vmatprep.subr.mxu0 0.0
        %1138 = vmatpush2.msra.mxu0 0.0
        %1139 = vmatprep.subr.mxu0 0.0
        %1140 = vmatpush2.msra.mxu0 0.0
        %1141 = vmatprep.subr.mxu0 0.0
        %1142 = vmatpush2.msra.mxu0 0.0
        %1143 = vmatprep.subr.mxu0 0.0
        %1144 = vmatpush2.msra.mxu0 0.0
        %1145 = vmatprep.subr.mxu0 0.0
        %1146 = vmatpush2.msra.mxu0 0.0
        %1147 = vmatprep.subr.mxu0 0.0
        %1148 = vmatpush2.msra.mxu0 0.0
        %1149 = vmatprep.subr.mxu0 0.0
        %1150 = vmatpush2.msra.mxu0 0.0
        %1151 = vmatprep.subr.mxu0 0.0
        %1152 = vmatpush2.msra.mxu0 0.0
        %1153 = vmatprep.subr.mxu0 0.0
        %1154 = vmatpush2.msra.mxu0 0.0
        %1155 = vmatprep.mubr.f32.mxu0 0.0
        %1156 = vmatmul.mubr.f32.gmra.mxu0 %v1089
        %v1157 = vpop.f32.mrf.mxu0
        %v1158 = vadd.f32 0.0, %v1157
        %v1159 = vpop.f32.mrf.mxu0
        %1160 = vdwg.mxu0
        %v1161 = vadd.f32 %v1009, %v1083
        %v1162 = vadd.f32 %v1010, %v1158
        %v1163 = vxor.u32 %v1161, 2147483648
        %v1164 = vxor.u32 %v1162, 2147483648
        %v1165 = vmul.f32 %v1163, 1.442695
        %v1166 = vpow.pop %v1165
        %v1167 = vmul.f32 %v1164, 1.442695
        %v1168 = vpow.pop %v1167
        %v1169 = vadd.f32 %v1166, 1.0
        %v1170 = vadd.f32 %v1168, 1.0
        %v1171 = vrcp.pop %v1169
        %v1172 = vmul.f32 1.0, %v1171
        %v1173 = vrcp.pop %v1170
        %v1174 = vmul.f32 1.0, %v1173
        %v1175 = vtanh.pop %v1161
        %v1176 = vtanh.pop %v1162
        %v1177 = vmul.f32 %v1172, %v1006
        %v1178 = vmul.f32 %v1174, %v1007
        %1181 = vrot.lane.b32.xlu0 %v1175, 64
        %v1182 = vpop.permute.xlu0 %1181
        %1183 = vrot.lane.b32.xlu0 %v1176, 64
        %v1184 = vpop.permute.xlu0 %1183
        %v1187 = vmul.f32 %v1172, %v1182
        %v1188 = vmul.f32 %v1174, %v1184
        %1191 = vrot.lane.b32.xlu0 %v1187, 32
        %v1192 = vpop.permute.xlu0 %1191
        %1193 = vrot.lane.b32.xlu0 %v1188, 32
        %v1194 = vpop.permute.xlu0 %1193
        %v1197 = vadd.f32 %v1177, %v1192
        %v1198 = vadd.f32 %v1178, %v1194
        %v1199 = vtanh.pop %v1197
        %v1200 = vtanh.pop %v1198
        %1203 = vrot.lane.b32.xlu0 %v1199, 64
        %v1204 = vpop.permute.xlu0 %1203
        %1205 = vrot.lane.b32.xlu0 %v1200, 64
        %v1206 = vpop.permute.xlu0 %1205
        %v1209 = vmul.f32 %v1172, %v1204
        %v1210 = vmul.f32 %v1174, %v1206
        %s1211 = scalar_lea.vmem %s212, 12
        %v1212 = vld [vmem:[%s1211] sm:$0x3]
        %v1213 = vld [vmem:[%s1211 + $0x2] sm:$0x3]
        %v1214 = vsub.f32 1.0, %v1212
        %v1215 = vsub.f32 1.0, %v1213
        %1217 = vset.pattern.permute.xlu0 0
        %1218 = vperm.xlu0 %1217, %v1212
        %v1219 = vpop.permute.xlu0 %1218
        %1222 = vset.pattern.permute.xlu0 0
        %1223 = vperm.xlu0 %1222, %v1213
        %v1224 = vpop.permute.xlu0 %1223
        %v1226 = vmul.f32 %v1219, %v1209
        %v1227 = vmul.f32 %v1224, %v1210
        %1230 = vrot.lane.b32.xlu0 %v1226, 32
        %v1231 = vpop.permute.xlu0 %1230
        %1232 = vrot.lane.b32.xlu0 %v1227, 32
        %v1233 = vpop.permute.xlu0 %1232
        %s1236 = scalar_lea.vmem %s199, 12 [#allocation7]
        %1237 = vst.msk [vmem:[%s1236] sm:$0x3] %vm467, %v1231
        %1238 = vst.msk [vmem:[%s1236 + $0x2] sm:$0x3] %vm467, %v1233
        %1240 = vset.pattern.permute.xlu0 0
        %1241 = vperm.xlu0 %1240, %v1214
        %v1242 = vpop.permute.xlu0 %1241
        %1245 = vset.pattern.permute.xlu0 0
        %1246 = vperm.xlu0 %1245, %v1215
        %v1247 = vpop.permute.xlu0 %1246
        %v1249 = vmul.f32 %v1242, %v1000
        %v1250 = vmul.f32 %v1247, %v1001
        %v1251 = vadd.f32 %v1226, %v1249
        %v1252 = vadd.f32 %v1227, %v1250
        %v1253 = vmul.f32 %v1219, %v1197
        %v1254 = vmul.f32 %v1224, %v1198
        %v1255 = vmul.f32 %v1242, %v1006
        %v1256 = vmul.f32 %v1247, %v1007
        %v1257 = vadd.f32 %v1253, %v1255
        %v1258 = vadd.f32 %v1254, %v1256
        %1261 = vrot.lane.b32.xlu0 %v1251, 32
        %v1262 = vpop.permute.xlu0 %1261
        %1263 = vrot.lane.b32.xlu0 %v1252, 32
        %v1264 = vpop.permute.xlu0 %1263
        %1267 = vst.msk [vmem:[#allocation2] sm:$0x3] %vm467, %v1262
        %1268 = vst.msk [vmem:[#allocation2 + $0x2] sm:$0x3] %vm467, %v1264
        %1271 = vrot.lane.b32.xlu0 %v1257, 96
        %v1272 = vpop.permute.xlu0 %1271
        %1273 = vrot.lane.b32.xlu0 %v1258, 96
        %v1274 = vpop.permute.xlu0 %1273
        %1277 = vst.msk [vmem:[#allocation3] sm:$0x3] %vm467, %v1272
        %1278 = vst.msk [vmem:[#allocation3 + $0x2] sm:$0x3] %vm467, %v1274
        %s1279 = sand.u32 %s99, 1
        %s1280 = scalar_lea.sflag [#allocation6], %s1279
        %s1281 = sand.u32 %s99, 1
        %s1282 = smul.addr %s1281, 16
        %s1283 = scalar_lea.vmem [#allocation7], %s1282
        // Predicated region
        $region41: #{tpu_custom_call.1} parent=31 // pred_check
          %p1284 = pneg %p109
        $region42: #{tpu_custom_call.1} parent=31 // pred_check_branch
          %1286 = sbr.rel (%p1284) target = $region44
        $region43: #{tpu_custom_call.1} parent=31 // pred_region
          %s1287 = smul.u32 4, %s18
          %s1289 = ssub.s32 256, 256
          %1290 = vsyncadd %s1280, %s1289
          %s1291 = smul.addr %s1287, 2
          %s1292 = smul.addr %s1291, 32
          %s1293 = scalar_lea.hbm %s3, %s1292
          %s1294 = sshll.u32 %s1283, 4
          %s1295 = int_to_ptr.vmem [resolvable:$true] %s1294
          %1300 = dma.vmem_to_hbm [thread:$0]  %s1295, 256, %s1293, %s1280, 32, 32, 2
        $region44: #{tpu_custom_call.1} parent=31 // pred_fallthru
          _
      $region32: #{tpu_custom_call.1} parent=5 // pred_fallthru
        _
      %p1301 = scmp.le.s32.totalorder 2, %s13
      // Predicated region
      $region45: #{tpu_custom_call.1} parent=5 // pred_check
        %p1302 = pneg %p1301
      $region46: #{tpu_custom_call.1} parent=5 // pred_check_branch
        %1304 = sbr.rel (%p1302) target = $region48
      $region47: #{tpu_custom_call.1} parent=5 // pred_region
        %s1305 = ssub.s32 %s13, 2
        // Predicated region
        $region49: #{tpu_custom_call.1} parent=47 // pred_check
          %p1306 = pneg %p115
        $region50: #{tpu_custom_call.1} parent=47 // pred_check_branch
          %1308 = sbr.rel (%p1306) target = $region52
        $region51: #{tpu_custom_call.1} parent=47 // pred_region
          %s1309 = sand.u32 %s100, 1
          %s1310 = scalar_lea.sflag [#allocation6], %s1309
          %s1311 = sand.u32 %s100, 1
          %s1312 = smul.addr %s1311, 16
          %s1313 = scalar_lea.vmem [#allocation7], %s1312
          %1314 = dma.done %s1310, 256
        $region52: #{tpu_custom_call.1} parent=47 // pred_fallthru
          _
      $region48: #{tpu_custom_call.1} parent=5 // pred_fallthru
        _
    $region6: #{tpu_custom_call.1} parent=1 // loop_footer
      %s17 = sadd.s32 1, %s13
    $region7: #{tpu_custom_call.1} parent=1 // loop_footer_branch
      %12 = sbr.rel target = $region3
    $region8: #{tpu_custom_call.1} parent=1 // loop_exit
      _
    %1315 = vsyncpa [#allocation5], 1
    %s1316 = scalar_lea.sflag [#allocation5], 1
    %1317 = vsyncpa %s1316, 1
    %1318 = vsyncpa [#allocation6], 1
    %s1319 = scalar_lea.sflag [#allocation6], 1
    %1320 = vsyncpa %s1319, 1

</llo_original>
